<compile_context>
chip_gen: v5e
topology: v5e:2x2
jax: 0.10.0
libtpu: 0.0.40
codegen_flags: <defaults>
</compile_context>

<pallas_src>
import jax
import jax.numpy as jnp
from jax.experimental import pallas as pl
from jax.experimental.pallas import tpu as pltpu

_LN_EPS = 1e-5          # nn.LayerNorm default
_NEG_SLOPE = 0.01       # nn.LeakyReLU default
_HP = jax.lax.Precision.HIGHEST


def _round_up(v, m):
    return ((v + m - 1) // m) * m


def _layer_norm_cols(h, gamma, beta):
    # h: (H, tb); normalize each column over the feature axis (axis 0).
    mu = jnp.mean(h, axis=0, keepdims=True)                       # (1, tb)
    var = jnp.mean((h - mu) * (h - mu), axis=0, keepdims=True)    # biased var
    hn = (h - mu) * jax.lax.rsqrt(var + _LN_EPS)
    return hn * gamma + beta                                      # gamma/beta: (H, 1)


def _leaky_relu(h):
    return jnp.where(h >= 0, h, _NEG_SLOPE * h)


def taxi_mlp_kernel(x_ref, p1_ref, p2_ref, b3_ref, o_ref):
    F = x_ref.shape[1]
    H1 = p1_ref.shape[0]

    x = x_ref[...]                                                # (tb, F) row-major tile
    p1 = p1_ref[...]                                              # (H1, F+3)  = [W1|b1|g1|be1]
    p2 = p2_ref[...]                                              # (H2, H1+4) = [W2|b2|g2|be2|w3^T]

    w1  = p1[:, :F]
    b1  = p1[:, F:F + 1]
    g1  = p1[:, F + 1:F + 2]
    be1 = p1[:, F + 2:F + 3]

    w2  = p2[:, :H1]
    b2  = p2[:, H1:H1 + 1]
    g2  = p2[:, H1 + 1:H1 + 2]
    be2 = p2[:, H1 + 2:H1 + 3]
    w3c = p2[:, H1 + 3:H1 + 4]                                    # (H2, 1)

    # input_layer:  (H1, F) contracted with (tb, F) over F -> (H1, tb).
    # Batch lands on the lane axis; no wrapper transpose of x needed.
    h = jax.lax.dot_general(w1, x, (((1,), (1,)), ((), ())),
                            preferred_element_type=jnp.float32,
                            precision=_HP) + b1
    h = _leaky_relu(_layer_norm_cols(h, g1, be1))                 # (H1, tb)

    # hidden_layer: (H2, H1) @ (H1, tb) -> (H2, tb)
    h = jax.lax.dot_general(w2, h, (((1,), (0,)), ((), ())),
                            preferred_element_type=jnp.float32,
                            precision=_HP) + b2
    h = _leaky_relu(_layer_norm_cols(h, g2, be2))                 # (H2, tb)

    # output_layer (M=1): VPU mul + sublane reduce instead of a 1-row MXU dot.
    out = jnp.sum(w3c * h, axis=0, keepdims=True) + b3_ref[0]     # (1, tb)
    o_ref[...] = out.astype(o_ref.dtype)


def pack_params(params):
    """Consolidate the 10 tiny parameter arrays into 3 DMA streams."""
    w1, b1, g1, be1, w2, b2, g2, be2, w3, b3 = params
    p1 = jnp.concatenate([w1, b1, g1, be1], axis=1)               # (H1, F+3)
    p2 = jnp.concatenate([w2, b2, g2, be2, w3.T], axis=1)         # (H2, H1+4)
    return p1, p2, jnp.asarray(b3, jnp.float32).reshape(1)        # b3 -> SMEM scalar


def taxi_forward(x, packed_params, *, tile_batch=8192):
    """Forward pass of Taxi_NeuralNet.

    x: (B, F) float32 (row-major, untouched in the wrapper).
    packed_params: output of `pack_params`.
    Returns (B, 1) float32.
    """
    B, F = x.shape
    p1, p2, b3 = packed_params
    H1 = p1.shape[0]
    H2 = p2.shape[0]

    # ---- choose the batch tile (rows per grid step) ------------------------
    lane_cover = _round_up(B, 128)                    # smallest lane-aligned cover of B
    tb = max(128, (tile_batch // 128) * 128)
    tb = min(tb, lane_cover)

    # Keep >= 2 grid steps when the batch allows it so both v7x TensorCores
    # get work; costs one extra ~0.35us step on single-TC chips (negligible).
    if lane_cover >= 256:
        tb = min(tb, _round_up(pl.cdiv(lane_cover, 2), 128))

    # VMEM clamp: per-batch-column f32 footprint (x tile lane-padded to 128,
    # double-buffered; generous 3x factor for LN temporaries/spills; output).
    per_col_bytes = 4 * (2 * _round_up(F, 128) + 3 * (H1 + H2) + 2 * 8)
    budget = 24 * 1024 * 1024
    tb_fit = max(128, (budget // per_col_bytes) // 128 * 128)
    tb = min(tb, tb_fit)

    grid = (pl.cdiv(B, tb),)                          # ragged tail handled by Pallas

    out_row = pl.pallas_call(
        taxi_mlp_kernel,
        out_shape=jax.ShapeDtypeStruct((1, B), jnp.float32),
        grid=grid,
        in_specs=[
            pl.BlockSpec((tb, F), lambda i: (i, 0)),              # x tile (row-major)
            pl.BlockSpec((H1, F + 3), lambda i: (0, 0)),          # packed layer-1 params
            pl.BlockSpec((H2, H1 + 4), lambda i: (0, 0)),         # packed layer-2 + w3
            pl.BlockSpec(memory_space=pltpu.MemorySpace.SMEM),    # b3 scalar
        ],
        out_specs=pl.BlockSpec((1, tb), lambda i: (0, i)),        # lane-dense row
        compiler_params=pltpu.CompilerParams(
            dimension_semantics=("parallel",),
            vmem_limit_bytes=32 * 1024 * 1024),
    )(x, p1, p2, b3)

    return out_row.reshape(B, 1)


def init_params(key, n_features):
    """PyTorch-like init.  Linear weights stored (out, in); biases and
    LayerNorm params stored (dim, 1) so they broadcast along the lane axis."""
    F = n_features
    H1, H2 = 4 * F, 2 * F
    ks = jax.random.split(key, 6)

    def lin(kw, kb, fan_in, fan_out):
        bound = 1.0 / jnp.sqrt(fan_in)
        w = jax.random.uniform(kw, (fan_out, fan_in), jnp.float32, -bound, bound)
        b = jax.random.uniform(kb, (fan_out, 1), jnp.float32, -bound, bound)
        return w, b

    w1, b1 = lin(ks[0], ks[1], F, H1)
    w2, b2 = lin(ks[2], ks[3], H1, H2)
    w3, b3 = lin(ks[4], ks[5], H2, 1)
    g1, be1 = jnp.ones((H1, 1), jnp.float32), jnp.zeros((H1, 1), jnp.float32)
    g2, be2 = jnp.ones((H2, 1), jnp.float32), jnp.zeros((H2, 1), jnp.float32)
    return (w1, b1, g1, be1, w2, b2, g2, be2, w3, b3)


def taxi_forward_ref(x, params):
    """Pure-JAX reference matching the PyTorch forward (row-major layout)."""
    w1, b1, g1, be1, w2, b2, g2, be2, w3, b3 = params

    def ln(h, gamma, beta):
        mu = jnp.mean(h, axis=-1, keepdims=True)
        var = jnp.mean((h - mu) * (h - mu), axis=-1, keepdims=True)
        return (h - mu) * jax.lax.rsqrt(var + _LN_EPS) * gamma.T + beta.T

    h = jnp.dot(x, w1.T, precision=_HP) + b1.T
    h = _leaky_relu(ln(h, g1, be1))
    h = jnp.dot(h, w2.T, precision=_HP) + b2.T
    h = _leaky_relu(ln(h, g2, be2))
    return jnp.dot(h, w3.T, precision=_HP) + b3.T


if __name__ == "__main__":
    key = jax.random.PRNGKey(0)
    k_x, k_p = jax.random.split(key)

    n_features = 8
    batch = 300   # deliberately not a multiple of 128 to exercise partial blocks
    x = jax.random.normal(k_x, (batch, n_features), dtype=jnp.float32)
    params = init_params(k_p, n_features)
    packed = pack_params(params)

    out = taxi_forward(x, packed, tile_batch=8192)
    out = jax.block_until_ready(out)

    ref = taxi_forward_ref(x, params)
    assert out.shape == (batch, 1)
    assert jnp.allclose(out, ref, atol=1e-4, rtol=1e-4), "mismatch vs reference"

    print("KERNEL_OK")
</pallas_src>

<mosaic_0001>
module attributes {stable_mosaic.version = 11 : i64} {
  func.func @taxi_mlp_kernel(%arg0: i32, %arg1: memref<256x8xf32, #tpu.memory_space<vmem>>, %arg2: memref<32x11xf32, #tpu.memory_space<vmem>>, %arg3: memref<16x36xf32, #tpu.memory_space<vmem>>, %arg4: memref<1xf32, #tpu.memory_space<smem>>, %arg5: memref<1x256xf32, #tpu.memory_space<vmem>>) attributes {dimension_semantics = [#tpu.dimension_semantics<parallel>], iteration_bounds = array<i64: 2>, scalar_prefetch = 0 : i64, scratch_operands = 0 : i64, tpu.core_type = #tpu.core_type<tc>, window_params = [{transform_indices = @transform_0, window_bounds = array<i64: 256, 8>}, {pipeline_mode = #tpu.pipeline_mode<synchronous>, transform_indices = @transform_1, window_bounds = array<i64: 32, 11>}, {pipeline_mode = #tpu.pipeline_mode<synchronous>, transform_indices = @transform_2, window_bounds = array<i64: 16, 36>}, {transform_indices = @transform_3, window_bounds = array<i64: 1>}, {transform_indices = @transform_4, window_bounds = array<i64: 1, 256>}]} {
    %c0 = arith.constant 0 : index
    %c0_0 = arith.constant 0 : index
    %0 = vector.load %arg1[%c0, %c0_0] : memref<256x8xf32, #tpu.memory_space<vmem>>, vector<256x8xf32>
    %c0_1 = arith.constant 0 : index
    %c0_2 = arith.constant 0 : index
    %1 = vector.load %arg2[%c0_1, %c0_2] : memref<32x11xf32, #tpu.memory_space<vmem>>, vector<32x11xf32>
    %c0_3 = arith.constant 0 : index
    %c0_4 = arith.constant 0 : index
    %2 = vector.load %arg3[%c0_3, %c0_4] : memref<16x36xf32, #tpu.memory_space<vmem>>, vector<16x36xf32>
    %3 = vector.extract_strided_slice %1 {offsets = [0, 0], sizes = [32, 8], strides = [1, 1]} : vector<32x11xf32> to vector<32x8xf32>
    %4 = vector.extract_strided_slice %1 {offsets = [0, 8], sizes = [32, 1], strides = [1, 1]} : vector<32x11xf32> to vector<32x1xf32>
    %5 = vector.extract_strided_slice %1 {offsets = [0, 9], sizes = [32, 1], strides = [1, 1]} : vector<32x11xf32> to vector<32x1xf32>
    %6 = vector.extract_strided_slice %1 {offsets = [0, 10], sizes = [32, 1], strides = [1, 1]} : vector<32x11xf32> to vector<32x1xf32>
    %7 = vector.extract_strided_slice %2 {offsets = [0, 0], sizes = [16, 32], strides = [1, 1]} : vector<16x36xf32> to vector<16x32xf32>
    %8 = vector.extract_strided_slice %2 {offsets = [0, 32], sizes = [16, 1], strides = [1, 1]} : vector<16x36xf32> to vector<16x1xf32>
    %9 = vector.extract_strided_slice %2 {offsets = [0, 33], sizes = [16, 1], strides = [1, 1]} : vector<16x36xf32> to vector<16x1xf32>
    %10 = vector.extract_strided_slice %2 {offsets = [0, 34], sizes = [16, 1], strides = [1, 1]} : vector<16x36xf32> to vector<16x1xf32>
    %11 = vector.extract_strided_slice %2 {offsets = [0, 35], sizes = [16, 1], strides = [1, 1]} : vector<16x36xf32> to vector<16x1xf32>
    %cst = arith.constant dense<0.000000e+00> : vector<32x256xf32>
    %12 = tpu.matmul %3, %0, %cst {dimension_numbers = #tpu.dot_dimension_numbers<[1], [1], [0], [0], [0, 0, 1, 0], [], []>, precision = #tpu.contract_precision<fp32>} : vector<32x8xf32>, vector<256x8xf32>, vector<32x256xf32> -> vector<32x256xf32>
    %13 = vector.broadcast %4 : vector<32x1xf32> to vector<32x256xf32>
    %14 = arith.addf %12, %13 : vector<32x256xf32>
    %cst_5 = arith.constant dense<0.000000e+00> : vector<256xf32>
    %15 = vector.multi_reduction <add>, %14, %cst_5 [0] : vector<32x256xf32> to vector<256xf32>
    %16 = vector.shape_cast %15 : vector<256xf32> to vector<1x256xf32>
    %cst_6 = arith.constant 3.200000e+01 : f32
    %17 = vector.broadcast %cst_6 : f32 to vector<1x256xf32>
    %18 = arith.divf %16, %17 : vector<1x256xf32>
    %19 = vector.broadcast %18 : vector<1x256xf32> to vector<32x256xf32>
    %20 = arith.subf %14, %19 : vector<32x256xf32>
    %21 = vector.broadcast %18 : vector<1x256xf32> to vector<32x256xf32>
    %22 = arith.subf %14, %21 : vector<32x256xf32>
    %23 = arith.mulf %20, %22 : vector<32x256xf32>
    %cst_7 = arith.constant dense<0.000000e+00> : vector<256xf32>
    %24 = vector.multi_reduction <add>, %23, %cst_7 [0] : vector<32x256xf32> to vector<256xf32>
    %25 = vector.shape_cast %24 : vector<256xf32> to vector<1x256xf32>
    %cst_8 = arith.constant 3.200000e+01 : f32
    %26 = vector.broadcast %cst_8 : f32 to vector<1x256xf32>
    %27 = arith.divf %25, %26 : vector<1x256xf32>
    %28 = vector.broadcast %18 : vector<1x256xf32> to vector<32x256xf32>
    %29 = arith.subf %14, %28 : vector<32x256xf32>
    %cst_9 = arith.constant 9.99999974E-6 : f32
    %30 = vector.broadcast %cst_9 : f32 to vector<1x256xf32>
    %31 = arith.addf %27, %30 : vector<1x256xf32>
    %32 = math.rsqrt %31 : vector<1x256xf32>
    %33 = vector.broadcast %32 : vector<1x256xf32> to vector<32x256xf32>
    %34 = arith.mulf %29, %33 : vector<32x256xf32>
    %35 = vector.broadcast %5 : vector<32x1xf32> to vector<32x256xf32>
    %36 = arith.mulf %34, %35 : vector<32x256xf32>
    %37 = vector.broadcast %6 : vector<32x1xf32> to vector<32x256xf32>
    %38 = arith.addf %36, %37 : vector<32x256xf32>
    %cst_10 = arith.constant 0.000000e+00 : f32
    %39 = vector.broadcast %cst_10 : f32 to vector<32x256xf32>
    %40 = arith.cmpf oge, %38, %39 : vector<32x256xf32>
    %cst_11 = arith.constant 0.00999999977 : f32
    %41 = vector.broadcast %cst_11 : f32 to vector<32x256xf32>
    %42 = arith.mulf %41, %38 : vector<32x256xf32>
    %43 = arith.select %40, %38, %42 : vector<32x256xi1>, vector<32x256xf32>
    %cst_12 = arith.constant dense<0.000000e+00> : vector<16x256xf32>
    %44 = tpu.matmul %7, %43, %cst_12 {dimension_numbers = #tpu.dot_dimension_numbers<[1], [0], [0], [1], [0, 0, 1, 1], [], []>, precision = #tpu.contract_precision<fp32>} : vector<16x32xf32>, vector<32x256xf32>, vector<16x256xf32> -> vector<16x256xf32>
    %45 = vector.broadcast %8 : vector<16x1xf32> to vector<16x256xf32>
    %46 = arith.addf %44, %45 : vector<16x256xf32>
    %cst_13 = arith.constant dense<0.000000e+00> : vector<256xf32>
    %47 = vector.multi_reduction <add>, %46, %cst_13 [0] : vector<16x256xf32> to vector<256xf32>
    %48 = vector.shape_cast %47 : vector<256xf32> to vector<1x256xf32>
    %cst_14 = arith.constant 1.600000e+01 : f32
    %49 = vector.broadcast %cst_14 : f32 to vector<1x256xf32>
    %50 = arith.divf %48, %49 : vector<1x256xf32>
    %51 = vector.broadcast %50 : vector<1x256xf32> to vector<16x256xf32>
    %52 = arith.subf %46, %51 : vector<16x256xf32>
    %53 = vector.broadcast %50 : vector<1x256xf32> to vector<16x256xf32>
    %54 = arith.subf %46, %53 : vector<16x256xf32>
    %55 = arith.mulf %52, %54 : vector<16x256xf32>
    %cst_15 = arith.constant dense<0.000000e+00> : vector<256xf32>
    %56 = vector.multi_reduction <add>, %55, %cst_15 [0] : vector<16x256xf32> to vector<256xf32>
    %57 = vector.shape_cast %56 : vector<256xf32> to vector<1x256xf32>
    %cst_16 = arith.constant 1.600000e+01 : f32
    %58 = vector.broadcast %cst_16 : f32 to vector<1x256xf32>
    %59 = arith.divf %57, %58 : vector<1x256xf32>
    %60 = vector.broadcast %50 : vector<1x256xf32> to vector<16x256xf32>
    %61 = arith.subf %46, %60 : vector<16x256xf32>
    %cst_17 = arith.constant 9.99999974E-6 : f32
    %62 = vector.broadcast %cst_17 : f32 to vector<1x256xf32>
    %63 = arith.addf %59, %62 : vector<1x256xf32>
    %64 = math.rsqrt %63 : vector<1x256xf32>
    %65 = vector.broadcast %64 : vector<1x256xf32> to vector<16x256xf32>
    %66 = arith.mulf %61, %65 : vector<16x256xf32>
    %67 = vector.broadcast %9 : vector<16x1xf32> to vector<16x256xf32>
    %68 = arith.mulf %66, %67 : vector<16x256xf32>
    %69 = vector.broadcast %10 : vector<16x1xf32> to vector<16x256xf32>
    %70 = arith.addf %68, %69 : vector<16x256xf32>
    %cst_18 = arith.constant 0.000000e+00 : f32
    %71 = vector.broadcast %cst_18 : f32 to vector<16x256xf32>
    %72 = arith.cmpf oge, %70, %71 : vector<16x256xf32>
    %cst_19 = arith.constant 0.00999999977 : f32
    %73 = vector.broadcast %cst_19 : f32 to vector<16x256xf32>
    %74 = arith.mulf %73, %70 : vector<16x256xf32>
    %75 = arith.select %72, %70, %74 : vector<16x256xi1>, vector<16x256xf32>
    %76 = vector.broadcast %11 : vector<16x1xf32> to vector<16x256xf32>
    %77 = arith.mulf %76, %75 : vector<16x256xf32>
    %cst_20 = arith.constant dense<0.000000e+00> : vector<256xf32>
    %78 = vector.multi_reduction <add>, %77, %cst_20 [0] : vector<16x256xf32> to vector<256xf32>
    %79 = vector.shape_cast %78 : vector<256xf32> to vector<1x256xf32>
    %c0_21 = arith.constant 0 : index
    %80 = memref.load %arg4[%c0_21] : memref<1xf32, #tpu.memory_space<smem>>
    %81 = vector.broadcast %80 : f32 to vector<1x256xf32>
    %82 = arith.addf %79, %81 : vector<1x256xf32>
    %c0_22 = arith.constant 0 : index
    %c0_23 = arith.constant 0 : index
    %83 = vector.load %arg5[%c0_22, %c0_23] : memref<1x256xf32, #tpu.memory_space<vmem>>, vector<1x256xf32>
    tpu.vector_store %arg5[%c0_22, %c0_23], %82 {strides = array<i32>} : memref<1x256xf32, #tpu.memory_space<vmem>>, vector<1x256xf32>,
    return
  }
  func.func @transform_0(%arg0: i32) -> (i32, i32) {
    %c0_i32 = arith.constant 0 : i32
    %c0_i32_0 = arith.constant 0 : i32
    return %arg0, %c0_i32 : i32, i32
  }
  func.func @transform_1(%arg0: i32) -> (i32, i32) {
    %c0_i32 = arith.constant 0 : i32
    %c0_i32_0 = arith.constant 0 : i32
    %c0_i32_1 = arith.constant 0 : i32
    return %c0_i32, %c0_i32_0 : i32, i32
  }
  func.func @transform_2(%arg0: i32) -> (i32, i32) {
    %c0_i32 = arith.constant 0 : i32
    %c0_i32_0 = arith.constant 0 : i32
    %c0_i32_1 = arith.constant 0 : i32
    return %c0_i32, %c0_i32_0 : i32, i32
  }
  func.func @transform_3(%arg0: i32) -> i32 {
    %c0_i32 = arith.constant 0 : i32
    %c0_i32_0 = arith.constant 0 : i32
    return %c0_i32 : i32
  }
  func.func @transform_4(%arg0: i32) -> (i32, i32) {
    %c0_i32 = arith.constant 0 : i32
    %c0_i32_0 = arith.constant 0 : i32
    return %c0_i32, %arg0 : i32, i32
  }
}

</mosaic_0001>

<llo_original>
// kernel: tpu_custom_call.1
$region0: #{tpu_custom_call.1}
  #allocation0 [shape = 'u32[]', space=smem, size = 0x4, offset = 0x4, fixed_abs, tag = 'smem constant byte address 0x4 - core index']
  #allocation1 [shape = 'u32[72,128]{1,0:T(1,128)}', space=vmem, size = 0x9000, scoped, tag = 'internal scratch']
  #allocation2 [shape = 'f32[1]{0:T(128)S(6)}', space=smem, size = 0x200, scoped, tag = 'scoped memory for tpu_custom_call.1']
  %s0 = inlined_call_operand.vmem [shape: f32[300,8], index: 0, kind: input, shape index: {}]
  %s1 = inlined_call_operand.vmem [shape: f32[32,11], index: 1, kind: input, shape index: {}]
  %s2 = inlined_call_operand.vmem [shape: f32[16,36], index: 2, kind: input, shape index: {}]
  %s3 = inlined_call_operand.<no memory space> [shape: f32[1], index: 3, kind: input, shape index: {}]
  %s4 = inlined_call_operand.hbm [shape: f32[1,300], index: 4, kind: output, shape index: {}]
  %s5 = sld [smem:[#allocation0]]
  $region49: #{tpu_custom_call.1} parent=0
    _
  %s7 = ssub.s32 1, %s5
  %s8 = scalar_select 0, %s7, %s5
  %9 = sst [smem:[#allocation2]] %s3
  $region1: #{tpu_custom_call.1} parent=0
    #allocation3 [shape = 'u8[2048]{0}', space=vmem, size = 0x800, scoped, tag = 'output window, operand 0']
    #allocation4 [shape = 's32[2]{0}', space=sflag, size = 0x8, scoped, tag = 'scoped memory for tpu_custom_call.1']
    %10 = vsyncpa [#allocation4], 0
    %s11 = scalar_lea.sflag [#allocation4], 1
    %12 = vsyncpa %s11, 0
    loop: start=0, step=1, limit=4
    $region2: #{tpu_custom_call.1} parent=1 // loop_pre_header
      _
    $region3: #{tpu_custom_call.1} parent=1 // loop_header
      %s14 = sphi 0, %s18
      %p15 = scmp.ge.s32.totalorder %s14, 4
      %s24 = sphi 0, %s26
      %s27 = sphi 0, %s24
      %s28 = sphi 0, %s27
      %s44 = sphi 0, %s28
      %s48 = sphi 0, %s48
      %s50 = sphi 0, %s48
      %s51 = sphi 0, %s50
      %s65 = sphi 0, %s51
      %s69 = sphi 0, %s69
      %s71 = sphi 0, %s69
      %s72 = sphi 0, %s71
      %s86 = sphi 0, %s72
      %s90 = sphi 0, %s90
      %s92 = sphi 0, %s90
      %s93 = sphi 0, %s92
      %s107 = sphi 0, %s93
      %s113 = sphi 0, %s115
      %s116 = sphi 0, %s113
      %s117 = sphi 0, %s116
      %s133 = sphi 0, %s117
    $region4: #{tpu_custom_call.1} parent=1 // loop_header_branch
      %17 = sbr.rel (%p15) target = $region8
    $region5: #{tpu_custom_call.1} parent=1 // loop_body
      %s19 = ssub.s32 %s14, 1
      %s20 = ssub.s32 %s14, 2
      %s21 = sadd.s32 %s14, 1
      %s22 = ssub.s32 %s14, %s21
      %p23 = scmp.eq.s32.totalorder %s22, 0
      %s25 = sadd.s32 %s24, 1
      %s26 = scalar_select %p23, %s24, %s25
      %p29 = pneg %p23
      %p30 = scmp.eq.s32.totalorder %s14, 1
      %p31 = por %p29, %p30
      %p32 = scmp.ne.s32.totalorder %s24, %s27
      %p33 = scmp.eq.s32.totalorder %s14, 0
      %p34 = por %p32, %p33
      %p35 = scmp.ne.s32.totalorder %s24, %s27
      %p36 = scmp.eq.s32.totalorder %s19, 1
      %p37 = por %p35, %p36
      %p38 = scmp.ne.s32.totalorder %s27, %s28
      %p39 = scmp.eq.s32.totalorder %s19, 0
      %p40 = por %p38, %p39
      %p41 = scmp.ne.s32.totalorder %s27, %s28
      %p42 = scmp.eq.s32.totalorder %s20, 1
      %p43 = por %p41, %p42
      %p45 = scmp.ne.s32.totalorder %s28, %s44
      %p46 = scmp.eq.s32.totalorder %s20, 0
      %p47 = por %p45, %p46
      %s49 = sadd.s32 %s48, 1
      %p52 = scmp.eq.s32.totalorder %s14, 1
      %p53 = scmp.ne.s32.totalorder %s48, %s50
      %p54 = scmp.eq.s32.totalorder %s14, 0
      %p55 = por %p53, %p54
      %p56 = scmp.ne.s32.totalorder %s48, %s50
      %p57 = scmp.eq.s32.totalorder %s19, 1
      %p58 = por %p56, %p57
      %p59 = scmp.ne.s32.totalorder %s50, %s51
      %p60 = scmp.eq.s32.totalorder %s19, 0
      %p61 = por %p59, %p60
      %p62 = scmp.ne.s32.totalorder %s50, %s51
      %p63 = scmp.eq.s32.totalorder %s20, 1
      %p64 = por %p62, %p63
      %p66 = scmp.ne.s32.totalorder %s51, %s65
      %p67 = scmp.eq.s32.totalorder %s20, 0
      %p68 = por %p66, %p67
      %s70 = sadd.s32 %s69, 1
      %p73 = scmp.eq.s32.totalorder %s14, 1
      %p74 = scmp.ne.s32.totalorder %s69, %s71
      %p75 = scmp.eq.s32.totalorder %s14, 0
      %p76 = por %p74, %p75
      %p77 = scmp.ne.s32.totalorder %s69, %s71
      %p78 = scmp.eq.s32.totalorder %s19, 1
      %p79 = por %p77, %p78
      %p80 = scmp.ne.s32.totalorder %s71, %s72
      %p81 = scmp.eq.s32.totalorder %s19, 0
      %p82 = por %p80, %p81
      %p83 = scmp.ne.s32.totalorder %s71, %s72
      %p84 = scmp.eq.s32.totalorder %s20, 1
      %p85 = por %p83, %p84
      %p87 = scmp.ne.s32.totalorder %s72, %s86
      %p88 = scmp.eq.s32.totalorder %s20, 0
      %p89 = por %p87, %p88
      %s91 = sadd.s32 %s90, 1
      %p94 = scmp.eq.s32.totalorder %s14, 1
      %p95 = scmp.ne.s32.totalorder %s90, %s92
      %p96 = scmp.eq.s32.totalorder %s14, 0
      %p97 = por %p95, %p96
      %p98 = scmp.ne.s32.totalorder %s90, %s92
      %p99 = scmp.eq.s32.totalorder %s19, 1
      %p100 = por %p98, %p99
      %p101 = scmp.ne.s32.totalorder %s92, %s93
      %p102 = scmp.eq.s32.totalorder %s19, 0
      %p103 = por %p101, %p102
      %p104 = scmp.ne.s32.totalorder %s92, %s93
      %p105 = scmp.eq.s32.totalorder %s20, 1
      %p106 = por %p104, %p105
      %p108 = scmp.ne.s32.totalorder %s93, %s107
      %p109 = scmp.eq.s32.totalorder %s20, 0
      %p110 = por %p108, %p109
      %s111 = ssub.s32 %s14, %s21
      %p112 = scmp.eq.s32.totalorder %s111, 0
      %s114 = sadd.s32 %s113, 1
      %s115 = scalar_select %p112, %s113, %s114
      %p118 = pneg %p112
      %p119 = scmp.eq.s32.totalorder %s14, 1
      %p120 = por %p118, %p119
      %p121 = scmp.ne.s32.totalorder %s113, %s116
      %p122 = scmp.eq.s32.totalorder %s14, 0
      %p123 = por %p121, %p122
      %p124 = scmp.ne.s32.totalorder %s113, %s116
      %p125 = scmp.eq.s32.totalorder %s19, 1
      %p126 = por %p124, %p125
      %p127 = scmp.ne.s32.totalorder %s116, %s117
      %p128 = scmp.eq.s32.totalorder %s19, 0
      %p129 = por %p127, %p128
      %p130 = scmp.ne.s32.totalorder %s116, %s117
      %p131 = scmp.eq.s32.totalorder %s20, 1
      %p132 = por %p130, %p131
      %p134 = scmp.ne.s32.totalorder %s117, %s133
      %p135 = scmp.eq.s32.totalorder %s20, 0
      %p136 = por %p134, %p135
      %p137 = scmp.le.s32.totalorder 1, %s14
      %p138 = scmp.lt.s32.totalorder %s14, 3
      %p139 = pnand %p137, %p138
      %p140 = pneg %p139
      // Predicated region
      $region9: #{tpu_custom_call.1} parent=5 // pred_check
        _
      $region10: #{tpu_custom_call.1} parent=5 // pred_check_branch
        %142 = sbr.rel (%p139) target = $region12
      $region11: #{tpu_custom_call.1} parent=5 // pred_region
        %s143 = ssub.s32 %s14, 1
        // Predicated region
        $region13: #{tpu_custom_call.1} parent=11 // pred_check
          %p144 = pneg %p61
        $region14: #{tpu_custom_call.1} parent=11 // pred_check_branch
          %146 = sbr.rel (%p144) target = $region16
        $region15: #{tpu_custom_call.1} parent=11 // pred_region
          _
        $region16: #{tpu_custom_call.1} parent=11 // pred_fallthru
          _
        // Predicated region
        $region17: #{tpu_custom_call.1} parent=11 // pred_check
          %p147 = pneg %p82
        $region18: #{tpu_custom_call.1} parent=11 // pred_check_branch
          %149 = sbr.rel (%p147) target = $region20
        $region19: #{tpu_custom_call.1} parent=11 // pred_region
          _
        $region20: #{tpu_custom_call.1} parent=11 // pred_fallthru
          _
        // Predicated region
        $region21: #{tpu_custom_call.1} parent=11 // pred_check
          %p150 = pneg %p103
        $region22: #{tpu_custom_call.1} parent=11 // pred_check_branch
          %152 = sbr.rel (%p150) target = $region24
        $region23: #{tpu_custom_call.1} parent=11 // pred_region
          _
        $region24: #{tpu_custom_call.1} parent=11 // pred_fallthru
          _
      $region12: #{tpu_custom_call.1} parent=5 // pred_fallthru
        _
      %p153 = scmp.lt.s32.totalorder %s14, 2
      // Predicated region
      $region25: #{tpu_custom_call.1} parent=5 // pred_check
        %p154 = pneg %p153
      $region26: #{tpu_custom_call.1} parent=5 // pred_check_branch
        %156 = sbr.rel (%p154) target = $region28
      $region27: #{tpu_custom_call.1} parent=5 // pred_region
        // Predicated region
        $region29: #{tpu_custom_call.1} parent=27 // pred_check
          %p157 = pneg %p34
        $region30: #{tpu_custom_call.1} parent=27 // pred_check_branch
          %159 = sbr.rel (%p157) target = $region32
        $region31: #{tpu_custom_call.1} parent=27 // pred_region
          %s160 = smul.u32 32, %s14
          %s161 = ssub.s32 38, %s160
          %p162 = scmp.lt.s32.totalorder %s161, 32
          %s163 = scalar_select %p162, %s161, 32
          %s164 = smul.u32 8, %s163
          %p165 = scmp.lt.s32.totalorder %s160, 37
          %s166 = scalar_select %p165, %s160, 37
          %s167 = smul.addr %s166, 8
          %s168 = scalar_lea.vmem %s0, %s167
          %s169 = smul.u32 32, %s14
          %s170 = ssub.s32 38, %s169
          %p171 = scmp.lt.s32.totalorder %s170, 32
          %s172 = scalar_select %p171, %s170, 32
          %s173 = smul.u32 8, %s172
        $region32: #{tpu_custom_call.1} parent=27 // pred_fallthru
          _
      $region28: #{tpu_custom_call.1} parent=5 // pred_fallthru
        _
      %p174 = scmp.le.s32.totalorder 1, %s14
      %p175 = scmp.lt.s32.totalorder %s14, 3
      %p176 = pnand %p174, %p175
      %p177 = pneg %p176
      // Predicated region
      $region33: #{tpu_custom_call.1} parent=5 // pred_check
        _
      $region34: #{tpu_custom_call.1} parent=5 // pred_check_branch
        %179 = sbr.rel (%p176) target = $region36
      $region35: #{tpu_custom_call.1} parent=5 // pred_region
        %s180 = ssub.s32 %s14, 1
        %s181 = smul.u32 32, %s19
        %s182 = ssub.s32 38, %s181
        %p183 = scmp.lt.s32.totalorder %s182, 32
        %s184 = scalar_select %p183, %s182, 32
        %s185 = smul.u32 8, %s184
        %p186 = scmp.lt.s32.totalorder %s181, 37
        %s187 = scalar_select %p186, %s181, 37
        %s188 = smul.addr %s187, 8
        %s189 = scalar_lea.vmem %s0, %s188
        %p190 = pneg %p40
        %p191 = pneg %p37
        %p192 = pneg %p61
        %p193 = pneg %p58
        %p194 = pneg %p82
        %p195 = pneg %p79
        %p196 = pneg %p103
        %p197 = pneg %p100
        %p198 = pneg %p129
        %p199 = pneg %p126
        %s200 = sand.u32 %s116, 1
        %s201 = scalar_lea.sflag [#allocation4], %s200
        %s202 = sand.u32 %s116, 1
        %s203 = smul.addr %s202, 2
        %s204 = scalar_lea.vmem [#allocation3], %s203
        %s205 = smul.u32 32, %s19
        %s206 = ssub.s32 38, %s205
        %p207 = scmp.lt.s32.totalorder %s206, 32
        %s208 = scalar_select %p207, %s206, 32
        %s209 = smul.u32 8, %s208
        %p210 = scmp.lt.s32.totalorder %s205, 37
        %s211 = scalar_select %p210, %s205, 37
        %s212 = smul.addr %s211, 8
        %s213 = scalar_lea.vmem %s0, %s212
        %s214 = smul.u32 32, %s19
        %s215 = ssub.s32 38, %s214
        %p216 = scmp.lt.s32.totalorder %s215, 32
        %s217 = scalar_select %p216, %s215, 32
        %s218 = smul.u32 8, %s217
        %s219 = smul.u32 2, %s19
        %s220 = ssub.s32 3, %s219
        %p221 = scmp.lt.s32.totalorder %s220, 2
        %s222 = scalar_select %p221, %s220, 2
        %v223 = vld [vmem:[%s213] sm:$0xff]
        %v224 = vld [vmem:[%s213 + $0x8] sm:$0xff]
        %v225 = vld [vmem:[%s213 + $0x10] sm:$0xff]
        %v226 = vld [vmem:[%s213 + $0x18] sm:$0xff]
        %v227 = vld [vmem:[%s213 + $0x20] sm:$0xff]
        %v228 = vld [vmem:[%s213 + $0x28] sm:$0xff]
        %v229 = vld [vmem:[%s213 + $0x30] sm:$0xff]
        %v230 = vld [vmem:[%s213 + $0x38] sm:$0xff]
        %v231 = vld [vmem:[%s213 + $0x40] sm:$0xff]
        %v232 = vld [vmem:[%s213 + $0x48] sm:$0xff]
        %v233 = vld [vmem:[%s213 + $0x50] sm:$0xff]
        %v234 = vld [vmem:[%s213 + $0x58] sm:$0xff]
        %v235 = vld [vmem:[%s213 + $0x60] sm:$0xff]
        %v236 = vld [vmem:[%s213 + $0x68] sm:$0xff]
        %v237 = vld [vmem:[%s213 + $0x70] sm:$0xff]
        %v238 = vld [vmem:[%s213 + $0x78] sm:$0xff]
        %v239 = vld [vmem:[%s213 + $0x80] sm:$0xff]
        %v240 = vld [vmem:[%s213 + $0x88] sm:$0xff]
        %v241 = vld [vmem:[%s213 + $0x90] sm:$0xff]
        %v242 = vld [vmem:[%s213 + $0x98] sm:$0xff]
        %v243 = vld [vmem:[%s213 + $0xa0] sm:$0xff]
        %v244 = vld [vmem:[%s213 + $0xa8] sm:$0xff]
        %v245 = vld [vmem:[%s213 + $0xb0] sm:$0xff]
        %v246 = vld [vmem:[%s213 + $0xb8] sm:$0xff]
        %v247 = vld [vmem:[%s213 + $0xc0] sm:$0xff]
        %v248 = vld [vmem:[%s213 + $0xc8] sm:$0xff]
        %v249 = vld [vmem:[%s213 + $0xd0] sm:$0xff]
        %v250 = vld [vmem:[%s213 + $0xd8] sm:$0xff]
        %v251 = vld [vmem:[%s213 + $0xe0] sm:$0xff]
        %v252 = vld [vmem:[%s213 + $0xe8] sm:$0xff]
        %v253 = vld [vmem:[%s213 + $0xf0] sm:$0xff]
        %v254 = vld [vmem:[%s213 + $0xf8] sm:$0xff]
        %v255 = vld [vmem:[%s1] sm:$0xff]
        %v256 = vld [vmem:[%s1 + $0x8] sm:$0xff]
        %v257 = vld [vmem:[%s1 + $0x10] sm:$0xff]
        %v258 = vld [vmem:[%s1 + $0x18] sm:$0xff]
        %v259 = vld [vmem:[%s2] sm:$0xff]
        %v260 = vld [vmem:[%s2 + $0x8] sm:$0xff]
        %262 = vset.pattern.permute.xlu0 8
        %263 = vperm.xlu0 %262, %v255
        %v264 = vpop.permute.xlu0 %263
        %267 = vset.pattern.permute.xlu0 8
        %268 = vperm.xlu0 %267, %v256
        %v269 = vpop.permute.xlu0 %268
        %272 = vset.pattern.permute.xlu0 8
        %273 = vperm.xlu0 %272, %v257
        %v274 = vpop.permute.xlu0 %273
        %277 = vset.pattern.permute.xlu0 8
        %278 = vperm.xlu0 %277, %v258
        %v279 = vpop.permute.xlu0 %278
        %vm281 = vcmask 64512
        %v282 = vsel %vm281, %v255, 0
        %v284 = vsel %vm281, %v256, 0
        %v286 = vsel %vm281, %v257, 0
        %v288 = vsel %vm281, %v258, 0
        %v291 = vsel %vm281, %v223, 0
        %v294 = vsel %vm281, %v224, 0
        %v297 = vsel %vm281, %v225, 0
        %v300 = vsel %vm281, %v226, 0
        %v303 = vsel %vm281, %v227, 0
        %v306 = vsel %vm281, %v228, 0
        %v309 = vsel %vm281, %v229, 0
        %v312 = vsel %vm281, %v230, 0
        %v315 = vsel %vm281, %v231, 0
        %v318 = vsel %vm281, %v232, 0
        %v321 = vsel %vm281, %v233, 0
        %v324 = vsel %vm281, %v234, 0
        %v327 = vsel %vm281, %v235, 0
        %v330 = vsel %vm281, %v236, 0
        %v333 = vsel %vm281, %v237, 0
        %v336 = vsel %vm281, %v238, 0
        %v339 = vsel %vm281, %v239, 0
        %v342 = vsel %vm281, %v240, 0
        %v345 = vsel %vm281, %v241, 0
        %v348 = vsel %vm281, %v242, 0
        %v351 = vsel %vm281, %v243, 0
        %v354 = vsel %vm281, %v244, 0
        %v357 = vsel %vm281, %v245, 0
        %v360 = vsel %vm281, %v246, 0
        %v363 = vsel %vm281, %v247, 0
        %v366 = vsel %vm281, %v248, 0
        %v369 = vsel %vm281, %v249, 0
        %v372 = vsel %vm281, %v250, 0
        %v375 = vsel %vm281, %v251, 0
        %v378 = vsel %vm281, %v252, 0
        %v381 = vsel %vm281, %v253, 0
        %v384 = vsel %vm281, %v254, 0
        %v386 = vand.u32 %v336, 4294901760
        %387 = vmatpush.xpose.msra.mxu0 %v386
        %v388 = vand.u32 %v333, 4294901760
        %389 = vmatpush.xpose.msra.mxu0 %v388
        %v390 = vand.u32 %v330, 4294901760
        %391 = vmatpush.xpose.msra.mxu0 %v390
        %v392 = vand.u32 %v327, 4294901760
        %393 = vmatpush.xpose.msra.mxu0 %v392
        %v394 = vand.u32 %v324, 4294901760
        %395 = vmatpush.xpose.msra.mxu0 %v394
        %v396 = vand.u32 %v321, 4294901760
        %397 = vmatpush.xpose.msra.mxu0 %v396
        %v398 = vand.u32 %v318, 4294901760
        %399 = vmatpush.xpose.msra.mxu0 %v398
        %v400 = vand.u32 %v315, 4294901760
        %401 = vmatpush.xpose.msra.mxu0 %v400
        %v402 = vand.u32 %v312, 4294901760
        %403 = vmatpush.xpose.msra.mxu0 %v402
        %v404 = vand.u32 %v309, 4294901760
        %405 = vmatpush.xpose.msra.mxu0 %v404
        %v406 = vand.u32 %v306, 4294901760
        %407 = vmatpush.xpose.msra.mxu0 %v406
        %v408 = vand.u32 %v303, 4294901760
        %409 = vmatpush.xpose.msra.mxu0 %v408
        %v410 = vand.u32 %v300, 4294901760
        %411 = vmatpush.xpose.msra.mxu0 %v410
        %v412 = vand.u32 %v297, 4294901760
        %413 = vmatpush.xpose.msra.mxu0 %v412
        %v414 = vand.u32 %v294, 4294901760
        %415 = vmatpush.xpose.msra.mxu0 %v414
        %v416 = vand.u32 %v291, 4294901760
        %417 = vmatpush.xpose.msra.mxu0 %v416
        %v418 = vand.u32 %v282, 4294901760
        %v419 = vsub.f32 %v282, %v418
        %v420 = vand.u32 %v419, 4294901760
        %v421 = vsub.f32 %v419, %v420
        %v422 = vand.u32 %v421, 4294901760
        %423 = vmatmul.f32.gmra.mxu0 %v422
        %v424 = vpop.f32.mrf.mxu0
        %v425 = vadd.f32 %v264, %v424
        %v426 = vand.u32 %v284, 4294901760
        %v427 = vsub.f32 %v284, %v426
        %v428 = vand.u32 %v427, 4294901760
        %v429 = vsub.f32 %v427, %v428
        %v430 = vand.u32 %v429, 4294901760
        %431 = vmatmul.f32.gmra.mxu0 %v430
        %v432 = vpop.f32.mrf.mxu0
        %v433 = vadd.f32 %v269, %v432
        %v434 = vand.u32 %v286, 4294901760
        %v435 = vsub.f32 %v286, %v434
        %v436 = vand.u32 %v435, 4294901760
        %v437 = vsub.f32 %v435, %v436
        %v438 = vand.u32 %v437, 4294901760
        %439 = vmatmul.f32.gmra.mxu0 %v438
        %v440 = vpop.f32.mrf.mxu0
        %v441 = vadd.f32 %v274, %v440
        %v442 = vand.u32 %v288, 4294901760
        %v443 = vsub.f32 %v288, %v442
        %v444 = vand.u32 %v443, 4294901760
        %v445 = vsub.f32 %v443, %v444
        %v446 = vand.u32 %v445, 4294901760
        %447 = vmatmul.f32.gmra.mxu0 %v446
        %v448 = vpop.f32.mrf.mxu0
        %v449 = vadd.f32 %v279, %v448
        %450 = vdwg.mxu0
        %v451 = vand.u32 %v336, 4294901760
        %v452 = vsub.f32 %v336, %v451
        %v453 = vand.u32 %v452, 4294901760
        %v454 = vsub.f32 %v452, %v453
        %v455 = vand.u32 %v454, 4294901760
        %456 = vmatpush.xpose.msra.mxu0 %v455
        %v457 = vand.u32 %v333, 4294901760
        %v458 = vsub.f32 %v333, %v457
        %v459 = vand.u32 %v458, 4294901760
        %v460 = vsub.f32 %v458, %v459
        %v461 = vand.u32 %v460, 4294901760
        %462 = vmatpush.xpose.msra.mxu0 %v461
        %v463 = vand.u32 %v330, 4294901760
        %v464 = vsub.f32 %v330, %v463
        %v465 = vand.u32 %v464, 4294901760
        %v466 = vsub.f32 %v464, %v465
        %v467 = vand.u32 %v466, 4294901760
        %468 = vmatpush.xpose.msra.mxu0 %v467
        %v469 = vand.u32 %v327, 4294901760
        %v470 = vsub.f32 %v327, %v469
        %v471 = vand.u32 %v470, 4294901760
        %v472 = vsub.f32 %v470, %v471
        %v473 = vand.u32 %v472, 4294901760
        %474 = vmatpush.xpose.msra.mxu0 %v473
        %v475 = vand.u32 %v324, 4294901760
        %v476 = vsub.f32 %v324, %v475
        %v477 = vand.u32 %v476, 4294901760
        %v478 = vsub.f32 %v476, %v477
        %v479 = vand.u32 %v478, 4294901760
        %480 = vmatpush.xpose.msra.mxu0 %v479
        %v481 = vand.u32 %v321, 4294901760
        %v482 = vsub.f32 %v321, %v481
        %v483 = vand.u32 %v482, 4294901760
        %v484 = vsub.f32 %v482, %v483
        %v485 = vand.u32 %v484, 4294901760
        %486 = vmatpush.xpose.msra.mxu0 %v485
        %v487 = vand.u32 %v318, 4294901760
        %v488 = vsub.f32 %v318, %v487
        %v489 = vand.u32 %v488, 4294901760
        %v490 = vsub.f32 %v488, %v489
        %v491 = vand.u32 %v490, 4294901760
        %492 = vmatpush.xpose.msra.mxu0 %v491
        %v493 = vand.u32 %v315, 4294901760
        %v494 = vsub.f32 %v315, %v493
        %v495 = vand.u32 %v494, 4294901760
        %v496 = vsub.f32 %v494, %v495
        %v497 = vand.u32 %v496, 4294901760
        %498 = vmatpush.xpose.msra.mxu0 %v497
        %v499 = vand.u32 %v312, 4294901760
        %v500 = vsub.f32 %v312, %v499
        %v501 = vand.u32 %v500, 4294901760
        %v502 = vsub.f32 %v500, %v501
        %v503 = vand.u32 %v502, 4294901760
        %504 = vmatpush.xpose.msra.mxu0 %v503
        %v505 = vand.u32 %v309, 4294901760
        %v506 = vsub.f32 %v309, %v505
        %v507 = vand.u32 %v506, 4294901760
        %v508 = vsub.f32 %v506, %v507
        %v509 = vand.u32 %v508, 4294901760
        %510 = vmatpush.xpose.msra.mxu0 %v509
        %v511 = vand.u32 %v306, 4294901760
        %v512 = vsub.f32 %v306, %v511
        %v513 = vand.u32 %v512, 4294901760
        %v514 = vsub.f32 %v512, %v513
        %v515 = vand.u32 %v514, 4294901760
        %516 = vmatpush.xpose.msra.mxu0 %v515
        %v517 = vand.u32 %v303, 4294901760
        %v518 = vsub.f32 %v303, %v517
        %v519 = vand.u32 %v518, 4294901760
        %v520 = vsub.f32 %v518, %v519
        %v521 = vand.u32 %v520, 4294901760
        %522 = vmatpush.xpose.msra.mxu0 %v521
        %v523 = vand.u32 %v300, 4294901760
        %v524 = vsub.f32 %v300, %v523
        %v525 = vand.u32 %v524, 4294901760
        %v526 = vsub.f32 %v524, %v525
        %v527 = vand.u32 %v526, 4294901760
        %528 = vmatpush.xpose.msra.mxu0 %v527
        %v529 = vand.u32 %v297, 4294901760
        %v530 = vsub.f32 %v297, %v529
        %v531 = vand.u32 %v530, 4294901760
        %v532 = vsub.f32 %v530, %v531
        %v533 = vand.u32 %v532, 4294901760
        %534 = vmatpush.xpose.msra.mxu0 %v533
        %v535 = vand.u32 %v294, 4294901760
        %v536 = vsub.f32 %v294, %v535
        %v537 = vand.u32 %v536, 4294901760
        %v538 = vsub.f32 %v536, %v537
        %v539 = vand.u32 %v538, 4294901760
        %540 = vmatpush.xpose.msra.mxu0 %v539
        %v541 = vand.u32 %v291, 4294901760
        %v542 = vsub.f32 %v291, %v541
        %v543 = vand.u32 %v542, 4294901760
        %v544 = vsub.f32 %v542, %v543
        %v545 = vand.u32 %v544, 4294901760
        %546 = vmatpush.xpose.msra.mxu0 %v545
        %v547 = vand.u32 %v282, 4294901760
        %548 = vmatmul.f32.gmra.mxu0 %v547
        %v549 = vpop.f32.mrf.mxu0
        %v550 = vadd.f32 %v425, %v549
        %v551 = vand.u32 %v284, 4294901760
        %552 = vmatmul.f32.gmra.mxu0 %v551
        %v553 = vpop.f32.mrf.mxu0
        %v554 = vadd.f32 %v433, %v553
        %v555 = vand.u32 %v286, 4294901760
        %556 = vmatmul.f32.gmra.mxu0 %v555
        %v557 = vpop.f32.mrf.mxu0
        %v558 = vadd.f32 %v441, %v557
        %v559 = vand.u32 %v288, 4294901760
        %560 = vmatmul.f32.gmra.mxu0 %v559
        %v561 = vpop.f32.mrf.mxu0
        %v562 = vadd.f32 %v449, %v561
        %563 = vdwg.mxu0
        %v564 = vand.u32 %v336, 4294901760
        %v565 = vsub.f32 %v336, %v564
        %566 = vmatpush.xpose.msra.mxu0 %v565
        %v567 = vand.u32 %v333, 4294901760
        %v568 = vsub.f32 %v333, %v567
        %569 = vmatpush.xpose.msra.mxu0 %v568
        %v570 = vand.u32 %v330, 4294901760
        %v571 = vsub.f32 %v330, %v570
        %572 = vmatpush.xpose.msra.mxu0 %v571
        %v573 = vand.u32 %v327, 4294901760
        %v574 = vsub.f32 %v327, %v573
        %575 = vmatpush.xpose.msra.mxu0 %v574
        %v576 = vand.u32 %v324, 4294901760
        %v577 = vsub.f32 %v324, %v576
        %578 = vmatpush.xpose.msra.mxu0 %v577
        %v579 = vand.u32 %v321, 4294901760
        %v580 = vsub.f32 %v321, %v579
        %581 = vmatpush.xpose.msra.mxu0 %v580
        %v582 = vand.u32 %v318, 4294901760
        %v583 = vsub.f32 %v318, %v582
        %584 = vmatpush.xpose.msra.mxu0 %v583
        %v585 = vand.u32 %v315, 4294901760
        %v586 = vsub.f32 %v315, %v585
        %587 = vmatpush.xpose.msra.mxu0 %v586
        %v588 = vand.u32 %v312, 4294901760
        %v589 = vsub.f32 %v312, %v588
        %590 = vmatpush.xpose.msra.mxu0 %v589
        %v591 = vand.u32 %v309, 4294901760
        %v592 = vsub.f32 %v309, %v591
        %593 = vmatpush.xpose.msra.mxu0 %v592
        %v594 = vand.u32 %v306, 4294901760
        %v595 = vsub.f32 %v306, %v594
        %596 = vmatpush.xpose.msra.mxu0 %v595
        %v597 = vand.u32 %v303, 4294901760
        %v598 = vsub.f32 %v303, %v597
        %599 = vmatpush.xpose.msra.mxu0 %v598
        %v600 = vand.u32 %v300, 4294901760
        %v601 = vsub.f32 %v300, %v600
        %602 = vmatpush.xpose.msra.mxu0 %v601
        %v603 = vand.u32 %v297, 4294901760
        %v604 = vsub.f32 %v297, %v603
        %605 = vmatpush.xpose.msra.mxu0 %v604
        %v606 = vand.u32 %v294, 4294901760
        %v607 = vsub.f32 %v294, %v606
        %608 = vmatpush.xpose.msra.mxu0 %v607
        %v609 = vand.u32 %v291, 4294901760
        %v610 = vsub.f32 %v291, %v609
        %611 = vmatpush.xpose.msra.mxu0 %v610
        %v612 = vand.u32 %v282, 4294901760
        %v613 = vsub.f32 %v282, %v612
        %614 = vmatmul.f32.gmra.mxu0 %v613
        %v615 = vpop.f32.mrf.mxu0
        %v616 = vadd.f32 %v550, %v615
        %v617 = vand.u32 %v284, 4294901760
        %v618 = vsub.f32 %v284, %v617
        %619 = vmatmul.f32.gmra.mxu0 %v618
        %v620 = vpop.f32.mrf.mxu0
        %v621 = vadd.f32 %v554, %v620
        %v622 = vand.u32 %v286, 4294901760
        %v623 = vsub.f32 %v286, %v622
        %624 = vmatmul.f32.gmra.mxu0 %v623
        %v625 = vpop.f32.mrf.mxu0
        %v626 = vadd.f32 %v558, %v625
        %v627 = vand.u32 %v288, 4294901760
        %v628 = vsub.f32 %v288, %v627
        %629 = vmatmul.f32.gmra.mxu0 %v628
        %v630 = vpop.f32.mrf.mxu0
        %v631 = vadd.f32 %v562, %v630
        %632 = vdwg.mxu0
        %v633 = vand.u32 %v336, 4294901760
        %634 = vmatpush.xpose.msra.mxu0 %v633
        %v635 = vand.u32 %v333, 4294901760
        %636 = vmatpush.xpose.msra.mxu0 %v635
        %v637 = vand.u32 %v330, 4294901760
        %638 = vmatpush.xpose.msra.mxu0 %v637
        %v639 = vand.u32 %v327, 4294901760
        %640 = vmatpush.xpose.msra.mxu0 %v639
        %v641 = vand.u32 %v324, 4294901760
        %642 = vmatpush.xpose.msra.mxu0 %v641
        %v643 = vand.u32 %v321, 4294901760
        %644 = vmatpush.xpose.msra.mxu0 %v643
        %v645 = vand.u32 %v318, 4294901760
        %646 = vmatpush.xpose.msra.mxu0 %v645
        %v647 = vand.u32 %v315, 4294901760
        %648 = vmatpush.xpose.msra.mxu0 %v647
        %v649 = vand.u32 %v312, 4294901760
        %650 = vmatpush.xpose.msra.mxu0 %v649
        %v651 = vand.u32 %v309, 4294901760
        %652 = vmatpush.xpose.msra.mxu0 %v651
        %v653 = vand.u32 %v306, 4294901760
        %654 = vmatpush.xpose.msra.mxu0 %v653
        %v655 = vand.u32 %v303, 4294901760
        %656 = vmatpush.xpose.msra.mxu0 %v655
        %v657 = vand.u32 %v300, 4294901760
        %658 = vmatpush.xpose.msra.mxu0 %v657
        %v659 = vand.u32 %v297, 4294901760
        %660 = vmatpush.xpose.msra.mxu0 %v659
        %v661 = vand.u32 %v294, 4294901760
        %662 = vmatpush.xpose.msra.mxu0 %v661
        %v663 = vand.u32 %v291, 4294901760
        %664 = vmatpush.xpose.msra.mxu0 %v663
        %v665 = vand.u32 %v282, 4294901760
        %v666 = vsub.f32 %v282, %v665
        %v667 = vand.u32 %v666, 4294901760
        %668 = vmatmul.f32.gmra.mxu0 %v667
        %v669 = vpop.f32.mrf.mxu0
        %v670 = vadd.f32 %v616, %v669
        %v671 = vand.u32 %v284, 4294901760
        %v672 = vsub.f32 %v284, %v671
        %v673 = vand.u32 %v672, 4294901760
        %674 = vmatmul.f32.gmra.mxu0 %v673
        %v675 = vpop.f32.mrf.mxu0
        %v676 = vadd.f32 %v621, %v675
        %v677 = vand.u32 %v286, 4294901760
        %v678 = vsub.f32 %v286, %v677
        %v679 = vand.u32 %v678, 4294901760
        %680 = vmatmul.f32.gmra.mxu0 %v679
        %v681 = vpop.f32.mrf.mxu0
        %v682 = vadd.f32 %v626, %v681
        %v683 = vand.u32 %v288, 4294901760
        %v684 = vsub.f32 %v288, %v683
        %v685 = vand.u32 %v684, 4294901760
        %686 = vmatmul.f32.gmra.mxu0 %v685
        %v687 = vpop.f32.mrf.mxu0
        %v688 = vadd.f32 %v631, %v687
        %689 = vdwg.mxu0
        %v690 = vand.u32 %v336, 4294901760
        %v691 = vsub.f32 %v336, %v690
        %v692 = vand.u32 %v691, 4294901760
        %693 = vmatpush.xpose.msra.mxu0 %v692
        %v694 = vand.u32 %v333, 4294901760
        %v695 = vsub.f32 %v333, %v694
        %v696 = vand.u32 %v695, 4294901760
        %697 = vmatpush.xpose.msra.mxu0 %v696
        %v698 = vand.u32 %v330, 4294901760
        %v699 = vsub.f32 %v330, %v698
        %v700 = vand.u32 %v699, 4294901760
        %701 = vmatpush.xpose.msra.mxu0 %v700
        %v702 = vand.u32 %v327, 4294901760
        %v703 = vsub.f32 %v327, %v702
        %v704 = vand.u32 %v703, 4294901760
        %705 = vmatpush.xpose.msra.mxu0 %v704
        %v706 = vand.u32 %v324, 4294901760
        %v707 = vsub.f32 %v324, %v706
        %v708 = vand.u32 %v707, 4294901760
        %709 = vmatpush.xpose.msra.mxu0 %v708
        %v710 = vand.u32 %v321, 4294901760
        %v711 = vsub.f32 %v321, %v710
        %v712 = vand.u32 %v711, 4294901760
        %713 = vmatpush.xpose.msra.mxu0 %v712
        %v714 = vand.u32 %v318, 4294901760
        %v715 = vsub.f32 %v318, %v714
        %v716 = vand.u32 %v715, 4294901760
        %717 = vmatpush.xpose.msra.mxu0 %v716
        %v718 = vand.u32 %v315, 4294901760
        %v719 = vsub.f32 %v315, %v718
        %v720 = vand.u32 %v719, 4294901760
        %721 = vmatpush.xpose.msra.mxu0 %v720
        %v722 = vand.u32 %v312, 4294901760
        %v723 = vsub.f32 %v312, %v722
        %v724 = vand.u32 %v723, 4294901760
        %725 = vmatpush.xpose.msra.mxu0 %v724
        %v726 = vand.u32 %v309, 4294901760
        %v727 = vsub.f32 %v309, %v726
        %v728 = vand.u32 %v727, 4294901760
        %729 = vmatpush.xpose.msra.mxu0 %v728
        %v730 = vand.u32 %v306, 4294901760
        %v731 = vsub.f32 %v306, %v730
        %v732 = vand.u32 %v731, 4294901760
        %733 = vmatpush.xpose.msra.mxu0 %v732
        %v734 = vand.u32 %v303, 4294901760
        %v735 = vsub.f32 %v303, %v734
        %v736 = vand.u32 %v735, 4294901760
        %737 = vmatpush.xpose.msra.mxu0 %v736
        %v738 = vand.u32 %v300, 4294901760
        %v739 = vsub.f32 %v300, %v738
        %v740 = vand.u32 %v739, 4294901760
        %741 = vmatpush.xpose.msra.mxu0 %v740
        %v742 = vand.u32 %v297, 4294901760
        %v743 = vsub.f32 %v297, %v742
        %v744 = vand.u32 %v743, 4294901760
        %745 = vmatpush.xpose.msra.mxu0 %v744
        %v746 = vand.u32 %v294, 4294901760
        %v747 = vsub.f32 %v294, %v746
        %v748 = vand.u32 %v747, 4294901760
        %749 = vmatpush.xpose.msra.mxu0 %v748
        %v750 = vand.u32 %v291, 4294901760
        %v751 = vsub.f32 %v291, %v750
        %v752 = vand.u32 %v751, 4294901760
        %753 = vmatpush.xpose.msra.mxu0 %v752
        %v754 = vand.u32 %v282, 4294901760
        %755 = vmatmul.f32.gmra.mxu0 %v754
        %v756 = vpop.f32.mrf.mxu0
        %v757 = vadd.f32 %v670, %v756
        %v758 = vand.u32 %v284, 4294901760
        %759 = vmatmul.f32.gmra.mxu0 %v758
        %v760 = vpop.f32.mrf.mxu0
        %v761 = vadd.f32 %v676, %v760
        %v762 = vand.u32 %v286, 4294901760
        %763 = vmatmul.f32.gmra.mxu0 %v762
        %v764 = vpop.f32.mrf.mxu0
        %v765 = vadd.f32 %v682, %v764
        %v766 = vand.u32 %v288, 4294901760
        %767 = vmatmul.f32.gmra.mxu0 %v766
        %v768 = vpop.f32.mrf.mxu0
        %v769 = vadd.f32 %v688, %v768
        %770 = vdwg.mxu0
        %v771 = vand.u32 %v336, 4294901760
        %772 = vmatpush.xpose.msra.mxu0 %v771
        %v773 = vand.u32 %v333, 4294901760
        %774 = vmatpush.xpose.msra.mxu0 %v773
        %v775 = vand.u32 %v330, 4294901760
        %776 = vmatpush.xpose.msra.mxu0 %v775
        %v777 = vand.u32 %v327, 4294901760
        %778 = vmatpush.xpose.msra.mxu0 %v777
        %v779 = vand.u32 %v324, 4294901760
        %780 = vmatpush.xpose.msra.mxu0 %v779
        %v781 = vand.u32 %v321, 4294901760
        %782 = vmatpush.xpose.msra.mxu0 %v781
        %v783 = vand.u32 %v318, 4294901760
        %784 = vmatpush.xpose.msra.mxu0 %v783
        %v785 = vand.u32 %v315, 4294901760
        %786 = vmatpush.xpose.msra.mxu0 %v785
        %v787 = vand.u32 %v312, 4294901760
        %788 = vmatpush.xpose.msra.mxu0 %v787
        %v789 = vand.u32 %v309, 4294901760
        %790 = vmatpush.xpose.msra.mxu0 %v789
        %v791 = vand.u32 %v306, 4294901760
        %792 = vmatpush.xpose.msra.mxu0 %v791
        %v793 = vand.u32 %v303, 4294901760
        %794 = vmatpush.xpose.msra.mxu0 %v793
        %v795 = vand.u32 %v300, 4294901760
        %796 = vmatpush.xpose.msra.mxu0 %v795
        %v797 = vand.u32 %v297, 4294901760
        %798 = vmatpush.xpose.msra.mxu0 %v797
        %v799 = vand.u32 %v294, 4294901760
        %800 = vmatpush.xpose.msra.mxu0 %v799
        %v801 = vand.u32 %v291, 4294901760
        %802 = vmatpush.xpose.msra.mxu0 %v801
        %v803 = vand.u32 %v282, 4294901760
        %804 = vmatmul.f32.gmra.mxu0 %v803
        %v805 = vpop.f32.mrf.mxu0
        %v806 = vadd.f32 %v757, %v805
        %v807 = vand.u32 %v284, 4294901760
        %808 = vmatmul.f32.gmra.mxu0 %v807
        %v809 = vpop.f32.mrf.mxu0
        %v810 = vadd.f32 %v761, %v809
        %v811 = vand.u32 %v286, 4294901760
        %812 = vmatmul.f32.gmra.mxu0 %v811
        %v813 = vpop.f32.mrf.mxu0
        %v814 = vadd.f32 %v765, %v813
        %v815 = vand.u32 %v288, 4294901760
        %816 = vmatmul.f32.gmra.mxu0 %v815
        %v817 = vpop.f32.mrf.mxu0
        %v818 = vadd.f32 %v769, %v817
        %819 = vdwg.mxu0
        %v820 = vand.u32 %v384, 4294901760
        %821 = vmatpush.xpose.msra.mxu0 %v820
        %v822 = vand.u32 %v381, 4294901760
        %823 = vmatpush.xpose.msra.mxu0 %v822
        %v824 = vand.u32 %v378, 4294901760
        %825 = vmatpush.xpose.msra.mxu0 %v824
        %v826 = vand.u32 %v375, 4294901760
        %827 = vmatpush.xpose.msra.mxu0 %v826
        %v828 = vand.u32 %v372, 4294901760
        %829 = vmatpush.xpose.msra.mxu0 %v828
        %v830 = vand.u32 %v369, 4294901760
        %831 = vmatpush.xpose.msra.mxu0 %v830
        %v832 = vand.u32 %v366, 4294901760
        %833 = vmatpush.xpose.msra.mxu0 %v832
        %v834 = vand.u32 %v363, 4294901760
        %835 = vmatpush.xpose.msra.mxu0 %v834
        %v836 = vand.u32 %v360, 4294901760
        %837 = vmatpush.xpose.msra.mxu0 %v836
        %v838 = vand.u32 %v357, 4294901760
        %839 = vmatpush.xpose.msra.mxu0 %v838
        %v840 = vand.u32 %v354, 4294901760
        %841 = vmatpush.xpose.msra.mxu0 %v840
        %v842 = vand.u32 %v351, 4294901760
        %843 = vmatpush.xpose.msra.mxu0 %v842
        %v844 = vand.u32 %v348, 4294901760
        %845 = vmatpush.xpose.msra.mxu0 %v844
        %v846 = vand.u32 %v345, 4294901760
        %847 = vmatpush.xpose.msra.mxu0 %v846
        %v848 = vand.u32 %v342, 4294901760
        %849 = vmatpush.xpose.msra.mxu0 %v848
        %v850 = vand.u32 %v339, 4294901760
        %851 = vmatpush.xpose.msra.mxu0 %v850
        %v852 = vand.u32 %v282, 4294901760
        %v853 = vsub.f32 %v282, %v852
        %v854 = vand.u32 %v853, 4294901760
        %v855 = vsub.f32 %v853, %v854
        %v856 = vand.u32 %v855, 4294901760
        %857 = vmatmul.f32.gmra.mxu0 %v856
        %v858 = vpop.f32.mrf.mxu0
        %v859 = vadd.f32 %v264, %v858
        %v860 = vand.u32 %v284, 4294901760
        %v861 = vsub.f32 %v284, %v860
        %v862 = vand.u32 %v861, 4294901760
        %v863 = vsub.f32 %v861, %v862
        %v864 = vand.u32 %v863, 4294901760
        %865 = vmatmul.f32.gmra.mxu0 %v864
        %v866 = vpop.f32.mrf.mxu0
        %v867 = vadd.f32 %v269, %v866
        %v868 = vand.u32 %v286, 4294901760
        %v869 = vsub.f32 %v286, %v868
        %v870 = vand.u32 %v869, 4294901760
        %v871 = vsub.f32 %v869, %v870
        %v872 = vand.u32 %v871, 4294901760
        %873 = vmatmul.f32.gmra.mxu0 %v872
        %v874 = vpop.f32.mrf.mxu0
        %v875 = vadd.f32 %v274, %v874
        %v876 = vand.u32 %v288, 4294901760
        %v877 = vsub.f32 %v288, %v876
        %v878 = vand.u32 %v877, 4294901760
        %v879 = vsub.f32 %v877, %v878
        %v880 = vand.u32 %v879, 4294901760
        %881 = vmatmul.f32.gmra.mxu0 %v880
        %v882 = vpop.f32.mrf.mxu0
        %v883 = vadd.f32 %v279, %v882
        %884 = vdwg.mxu0
        %v885 = vand.u32 %v384, 4294901760
        %v886 = vsub.f32 %v384, %v885
        %v887 = vand.u32 %v886, 4294901760
        %v888 = vsub.f32 %v886, %v887
        %v889 = vand.u32 %v888, 4294901760
        %890 = vmatpush.xpose.msra.mxu0 %v889
        %v891 = vand.u32 %v381, 4294901760
        %v892 = vsub.f32 %v381, %v891
        %v893 = vand.u32 %v892, 4294901760
        %v894 = vsub.f32 %v892, %v893
        %v895 = vand.u32 %v894, 4294901760
        %896 = vmatpush.xpose.msra.mxu0 %v895
        %v897 = vand.u32 %v378, 4294901760
        %v898 = vsub.f32 %v378, %v897
        %v899 = vand.u32 %v898, 4294901760
        %v900 = vsub.f32 %v898, %v899
        %v901 = vand.u32 %v900, 4294901760
        %902 = vmatpush.xpose.msra.mxu0 %v901
        %v903 = vand.u32 %v375, 4294901760
        %v904 = vsub.f32 %v375, %v903
        %v905 = vand.u32 %v904, 4294901760
        %v906 = vsub.f32 %v904, %v905
        %v907 = vand.u32 %v906, 4294901760
        %908 = vmatpush.xpose.msra.mxu0 %v907
        %v909 = vand.u32 %v372, 4294901760
        %v910 = vsub.f32 %v372, %v909
        %v911 = vand.u32 %v910, 4294901760
        %v912 = vsub.f32 %v910, %v911
        %v913 = vand.u32 %v912, 4294901760
        %914 = vmatpush.xpose.msra.mxu0 %v913
        %v915 = vand.u32 %v369, 4294901760
        %v916 = vsub.f32 %v369, %v915
        %v917 = vand.u32 %v916, 4294901760
        %v918 = vsub.f32 %v916, %v917
        %v919 = vand.u32 %v918, 4294901760
        %920 = vmatpush.xpose.msra.mxu0 %v919
        %v921 = vand.u32 %v366, 4294901760
        %v922 = vsub.f32 %v366, %v921
        %v923 = vand.u32 %v922, 4294901760
        %v924 = vsub.f32 %v922, %v923
        %v925 = vand.u32 %v924, 4294901760
        %926 = vmatpush.xpose.msra.mxu0 %v925
        %v927 = vand.u32 %v363, 4294901760
        %v928 = vsub.f32 %v363, %v927
        %v929 = vand.u32 %v928, 4294901760
        %v930 = vsub.f32 %v928, %v929
        %v931 = vand.u32 %v930, 4294901760
        %932 = vmatpush.xpose.msra.mxu0 %v931
        %v933 = vand.u32 %v360, 4294901760
        %v934 = vsub.f32 %v360, %v933
        %v935 = vand.u32 %v934, 4294901760
        %v936 = vsub.f32 %v934, %v935
        %v937 = vand.u32 %v936, 4294901760
        %938 = vmatpush.xpose.msra.mxu0 %v937
        %v939 = vand.u32 %v357, 4294901760
        %v940 = vsub.f32 %v357, %v939
        %v941 = vand.u32 %v940, 4294901760
        %v942 = vsub.f32 %v940, %v941
        %v943 = vand.u32 %v942, 4294901760
        %944 = vmatpush.xpose.msra.mxu0 %v943
        %v945 = vand.u32 %v354, 4294901760
        %v946 = vsub.f32 %v354, %v945
        %v947 = vand.u32 %v946, 4294901760
        %v948 = vsub.f32 %v946, %v947
        %v949 = vand.u32 %v948, 4294901760
        %950 = vmatpush.xpose.msra.mxu0 %v949
        %v951 = vand.u32 %v351, 4294901760
        %v952 = vsub.f32 %v351, %v951
        %v953 = vand.u32 %v952, 4294901760
        %v954 = vsub.f32 %v952, %v953
        %v955 = vand.u32 %v954, 4294901760
        %956 = vmatpush.xpose.msra.mxu0 %v955
        %v957 = vand.u32 %v348, 4294901760
        %v958 = vsub.f32 %v348, %v957
        %v959 = vand.u32 %v958, 4294901760
        %v960 = vsub.f32 %v958, %v959
        %v961 = vand.u32 %v960, 4294901760
        %962 = vmatpush.xpose.msra.mxu0 %v961
        %v963 = vand.u32 %v345, 4294901760
        %v964 = vsub.f32 %v345, %v963
        %v965 = vand.u32 %v964, 4294901760
        %v966 = vsub.f32 %v964, %v965
        %v967 = vand.u32 %v966, 4294901760
        %968 = vmatpush.xpose.msra.mxu0 %v967
        %v969 = vand.u32 %v342, 4294901760
        %v970 = vsub.f32 %v342, %v969
        %v971 = vand.u32 %v970, 4294901760
        %v972 = vsub.f32 %v970, %v971
        %v973 = vand.u32 %v972, 4294901760
        %974 = vmatpush.xpose.msra.mxu0 %v973
        %v975 = vand.u32 %v339, 4294901760
        %v976 = vsub.f32 %v339, %v975
        %v977 = vand.u32 %v976, 4294901760
        %v978 = vsub.f32 %v976, %v977
        %v979 = vand.u32 %v978, 4294901760
        %980 = vmatpush.xpose.msra.mxu0 %v979
        %v981 = vand.u32 %v282, 4294901760
        %982 = vmatmul.f32.gmra.mxu0 %v981
        %v983 = vpop.f32.mrf.mxu0
        %v984 = vadd.f32 %v859, %v983
        %v985 = vand.u32 %v284, 4294901760
        %986 = vmatmul.f32.gmra.mxu0 %v985
        %v987 = vpop.f32.mrf.mxu0
        %v988 = vadd.f32 %v867, %v987
        %v989 = vand.u32 %v286, 4294901760
        %990 = vmatmul.f32.gmra.mxu0 %v989
        %v991 = vpop.f32.mrf.mxu0
        %v992 = vadd.f32 %v875, %v991
        %v993 = vand.u32 %v288, 4294901760
        %994 = vmatmul.f32.gmra.mxu0 %v993
        %v995 = vpop.f32.mrf.mxu0
        %v996 = vadd.f32 %v883, %v995
        %997 = vdwg.mxu0
        %v998 = vand.u32 %v384, 4294901760
        %v999 = vsub.f32 %v384, %v998
        %1000 = vmatpush.xpose.msra.mxu0 %v999
        %v1001 = vand.u32 %v381, 4294901760
        %v1002 = vsub.f32 %v381, %v1001
        %1003 = vmatpush.xpose.msra.mxu0 %v1002
        %v1004 = vand.u32 %v378, 4294901760
        %v1005 = vsub.f32 %v378, %v1004
        %1006 = vmatpush.xpose.msra.mxu0 %v1005
        %v1007 = vand.u32 %v375, 4294901760
        %v1008 = vsub.f32 %v375, %v1007
        %1009 = vmatpush.xpose.msra.mxu0 %v1008
        %v1010 = vand.u32 %v372, 4294901760
        %v1011 = vsub.f32 %v372, %v1010
        %1012 = vmatpush.xpose.msra.mxu0 %v1011
        %v1013 = vand.u32 %v369, 4294901760
        %v1014 = vsub.f32 %v369, %v1013
        %1015 = vmatpush.xpose.msra.mxu0 %v1014
        %v1016 = vand.u32 %v366, 4294901760
        %v1017 = vsub.f32 %v366, %v1016
        %1018 = vmatpush.xpose.msra.mxu0 %v1017
        %v1019 = vand.u32 %v363, 4294901760
        %v1020 = vsub.f32 %v363, %v1019
        %1021 = vmatpush.xpose.msra.mxu0 %v1020
        %v1022 = vand.u32 %v360, 4294901760
        %v1023 = vsub.f32 %v360, %v1022
        %1024 = vmatpush.xpose.msra.mxu0 %v1023
        %v1025 = vand.u32 %v357, 4294901760
        %v1026 = vsub.f32 %v357, %v1025
        %1027 = vmatpush.xpose.msra.mxu0 %v1026
        %v1028 = vand.u32 %v354, 4294901760
        %v1029 = vsub.f32 %v354, %v1028
        %1030 = vmatpush.xpose.msra.mxu0 %v1029
        %v1031 = vand.u32 %v351, 4294901760
        %v1032 = vsub.f32 %v351, %v1031
        %1033 = vmatpush.xpose.msra.mxu0 %v1032
        %v1034 = vand.u32 %v348, 4294901760
        %v1035 = vsub.f32 %v348, %v1034
        %1036 = vmatpush.xpose.msra.mxu0 %v1035
        %v1037 = vand.u32 %v345, 4294901760
        %v1038 = vsub.f32 %v345, %v1037
        %1039 = vmatpush.xpose.msra.mxu0 %v1038
        %v1040 = vand.u32 %v342, 4294901760
        %v1041 = vsub.f32 %v342, %v1040
        %1042 = vmatpush.xpose.msra.mxu0 %v1041
        %v1043 = vand.u32 %v339, 4294901760
        %v1044 = vsub.f32 %v339, %v1043
        %1045 = vmatpush.xpose.msra.mxu0 %v1044
        %v1046 = vand.u32 %v282, 4294901760
        %v1047 = vsub.f32 %v282, %v1046
        %1048 = vmatmul.f32.gmra.mxu0 %v1047
        %v1049 = vpop.f32.mrf.mxu0
        %v1050 = vadd.f32 %v984, %v1049
        %v1051 = vand.u32 %v284, 4294901760
        %v1052 = vsub.f32 %v284, %v1051
        %1053 = vmatmul.f32.gmra.mxu0 %v1052
        %v1054 = vpop.f32.mrf.mxu0
        %v1055 = vadd.f32 %v988, %v1054
        %v1056 = vand.u32 %v286, 4294901760
        %v1057 = vsub.f32 %v286, %v1056
        %1058 = vmatmul.f32.gmra.mxu0 %v1057
        %v1059 = vpop.f32.mrf.mxu0
        %v1060 = vadd.f32 %v992, %v1059
        %v1061 = vand.u32 %v288, 4294901760
        %v1062 = vsub.f32 %v288, %v1061
        %1063 = vmatmul.f32.gmra.mxu0 %v1062
        %v1064 = vpop.f32.mrf.mxu0
        %v1065 = vadd.f32 %v996, %v1064
        %1066 = vdwg.mxu0
        %v1067 = vand.u32 %v384, 4294901760
        %1068 = vmatpush.xpose.msra.mxu0 %v1067
        %v1069 = vand.u32 %v381, 4294901760
        %1070 = vmatpush.xpose.msra.mxu0 %v1069
        %v1071 = vand.u32 %v378, 4294901760
        %1072 = vmatpush.xpose.msra.mxu0 %v1071
        %v1073 = vand.u32 %v375, 4294901760
        %1074 = vmatpush.xpose.msra.mxu0 %v1073
        %v1075 = vand.u32 %v372, 4294901760
        %1076 = vmatpush.xpose.msra.mxu0 %v1075
        %v1077 = vand.u32 %v369, 4294901760
        %1078 = vmatpush.xpose.msra.mxu0 %v1077
        %v1079 = vand.u32 %v366, 4294901760
        %1080 = vmatpush.xpose.msra.mxu0 %v1079
        %v1081 = vand.u32 %v363, 4294901760
        %1082 = vmatpush.xpose.msra.mxu0 %v1081
        %v1083 = vand.u32 %v360, 4294901760
        %1084 = vmatpush.xpose.msra.mxu0 %v1083
        %v1085 = vand.u32 %v357, 4294901760
        %1086 = vmatpush.xpose.msra.mxu0 %v1085
        %v1087 = vand.u32 %v354, 4294901760
        %1088 = vmatpush.xpose.msra.mxu0 %v1087
        %v1089 = vand.u32 %v351, 4294901760
        %1090 = vmatpush.xpose.msra.mxu0 %v1089
        %v1091 = vand.u32 %v348, 4294901760
        %1092 = vmatpush.xpose.msra.mxu0 %v1091
        %v1093 = vand.u32 %v345, 4294901760
        %1094 = vmatpush.xpose.msra.mxu0 %v1093
        %v1095 = vand.u32 %v342, 4294901760
        %1096 = vmatpush.xpose.msra.mxu0 %v1095
        %v1097 = vand.u32 %v339, 4294901760
        %1098 = vmatpush.xpose.msra.mxu0 %v1097
        %v1099 = vand.u32 %v282, 4294901760
        %v1100 = vsub.f32 %v282, %v1099
        %v1101 = vand.u32 %v1100, 4294901760
        %1102 = vmatmul.f32.gmra.mxu0 %v1101
        %v1103 = vpop.f32.mrf.mxu0
        %v1104 = vadd.f32 %v1050, %v1103
        %v1105 = vand.u32 %v284, 4294901760
        %v1106 = vsub.f32 %v284, %v1105
        %v1107 = vand.u32 %v1106, 4294901760
        %1108 = vmatmul.f32.gmra.mxu0 %v1107
        %v1109 = vpop.f32.mrf.mxu0
        %v1110 = vadd.f32 %v1055, %v1109
        %v1111 = vand.u32 %v286, 4294901760
        %v1112 = vsub.f32 %v286, %v1111
        %v1113 = vand.u32 %v1112, 4294901760
        %1114 = vmatmul.f32.gmra.mxu0 %v1113
        %v1115 = vpop.f32.mrf.mxu0
        %v1116 = vadd.f32 %v1060, %v1115
        %v1117 = vand.u32 %v288, 4294901760
        %v1118 = vsub.f32 %v288, %v1117
        %v1119 = vand.u32 %v1118, 4294901760
        %1120 = vmatmul.f32.gmra.mxu0 %v1119
        %v1121 = vpop.f32.mrf.mxu0
        %v1122 = vadd.f32 %v1065, %v1121
        %1123 = vdwg.mxu0
        %v1124 = vand.u32 %v384, 4294901760
        %v1125 = vsub.f32 %v384, %v1124
        %v1126 = vand.u32 %v1125, 4294901760
        %1127 = vmatpush.xpose.msra.mxu0 %v1126
        %v1128 = vand.u32 %v381, 4294901760
        %v1129 = vsub.f32 %v381, %v1128
        %v1130 = vand.u32 %v1129, 4294901760
        %1131 = vmatpush.xpose.msra.mxu0 %v1130
        %v1132 = vand.u32 %v378, 4294901760
        %v1133 = vsub.f32 %v378, %v1132
        %v1134 = vand.u32 %v1133, 4294901760
        %1135 = vmatpush.xpose.msra.mxu0 %v1134
        %v1136 = vand.u32 %v375, 4294901760
        %v1137 = vsub.f32 %v375, %v1136
        %v1138 = vand.u32 %v1137, 4294901760
        %1139 = vmatpush.xpose.msra.mxu0 %v1138
        %v1140 = vand.u32 %v372, 4294901760
        %v1141 = vsub.f32 %v372, %v1140
        %v1142 = vand.u32 %v1141, 4294901760
        %1143 = vmatpush.xpose.msra.mxu0 %v1142
        %v1144 = vand.u32 %v369, 4294901760
        %v1145 = vsub.f32 %v369, %v1144
        %v1146 = vand.u32 %v1145, 4294901760
        %1147 = vmatpush.xpose.msra.mxu0 %v1146
        %v1148 = vand.u32 %v366, 4294901760
        %v1149 = vsub.f32 %v366, %v1148
        %v1150 = vand.u32 %v1149, 4294901760
        %1151 = vmatpush.xpose.msra.mxu0 %v1150
        %v1152 = vand.u32 %v363, 4294901760
        %v1153 = vsub.f32 %v363, %v1152
        %v1154 = vand.u32 %v1153, 4294901760
        %1155 = vmatpush.xpose.msra.mxu0 %v1154
        %v1156 = vand.u32 %v360, 4294901760
        %v1157 = vsub.f32 %v360, %v1156
        %v1158 = vand.u32 %v1157, 4294901760
        %1159 = vmatpush.xpose.msra.mxu0 %v1158
        %v1160 = vand.u32 %v357, 4294901760
        %v1161 = vsub.f32 %v357, %v1160
        %v1162 = vand.u32 %v1161, 4294901760
        %1163 = vmatpush.xpose.msra.mxu0 %v1162
        %v1164 = vand.u32 %v354, 4294901760
        %v1165 = vsub.f32 %v354, %v1164
        %v1166 = vand.u32 %v1165, 4294901760
        %1167 = vmatpush.xpose.msra.mxu0 %v1166
        %v1168 = vand.u32 %v351, 4294901760
        %v1169 = vsub.f32 %v351, %v1168
        %v1170 = vand.u32 %v1169, 4294901760
        %1171 = vmatpush.xpose.msra.mxu0 %v1170
        %v1172 = vand.u32 %v348, 4294901760
        %v1173 = vsub.f32 %v348, %v1172
        %v1174 = vand.u32 %v1173, 4294901760
        %1175 = vmatpush.xpose.msra.mxu0 %v1174
        %v1176 = vand.u32 %v345, 4294901760
        %v1177 = vsub.f32 %v345, %v1176
        %v1178 = vand.u32 %v1177, 4294901760
        %1179 = vmatpush.xpose.msra.mxu0 %v1178
        %v1180 = vand.u32 %v342, 4294901760
        %v1181 = vsub.f32 %v342, %v1180
        %v1182 = vand.u32 %v1181, 4294901760
        %1183 = vmatpush.xpose.msra.mxu0 %v1182
        %v1184 = vand.u32 %v339, 4294901760
        %v1185 = vsub.f32 %v339, %v1184
        %v1186 = vand.u32 %v1185, 4294901760
        %1187 = vmatpush.xpose.msra.mxu0 %v1186
        %v1188 = vand.u32 %v282, 4294901760
        %1189 = vmatmul.f32.gmra.mxu0 %v1188
        %v1190 = vpop.f32.mrf.mxu0
        %v1191 = vadd.f32 %v1104, %v1190
        %v1192 = vand.u32 %v284, 4294901760
        %1193 = vmatmul.f32.gmra.mxu0 %v1192
        %v1194 = vpop.f32.mrf.mxu0
        %v1195 = vadd.f32 %v1110, %v1194
        %v1196 = vand.u32 %v286, 4294901760
        %1197 = vmatmul.f32.gmra.mxu0 %v1196
        %v1198 = vpop.f32.mrf.mxu0
        %v1199 = vadd.f32 %v1116, %v1198
        %v1200 = vand.u32 %v288, 4294901760
        %1201 = vmatmul.f32.gmra.mxu0 %v1200
        %v1202 = vpop.f32.mrf.mxu0
        %v1203 = vadd.f32 %v1122, %v1202
        %1204 = vdwg.mxu0
        %v1205 = vand.u32 %v384, 4294901760
        %1206 = vmatpush.xpose.msra.mxu0 %v1205
        %v1207 = vand.u32 %v381, 4294901760
        %1208 = vmatpush.xpose.msra.mxu0 %v1207
        %v1209 = vand.u32 %v378, 4294901760
        %1210 = vmatpush.xpose.msra.mxu0 %v1209
        %v1211 = vand.u32 %v375, 4294901760
        %1212 = vmatpush.xpose.msra.mxu0 %v1211
        %v1213 = vand.u32 %v372, 4294901760
        %1214 = vmatpush.xpose.msra.mxu0 %v1213
        %v1215 = vand.u32 %v369, 4294901760
        %1216 = vmatpush.xpose.msra.mxu0 %v1215
        %v1217 = vand.u32 %v366, 4294901760
        %1218 = vmatpush.xpose.msra.mxu0 %v1217
        %v1219 = vand.u32 %v363, 4294901760
        %1220 = vmatpush.xpose.msra.mxu0 %v1219
        %v1221 = vand.u32 %v360, 4294901760
        %1222 = vmatpush.xpose.msra.mxu0 %v1221
        %v1223 = vand.u32 %v357, 4294901760
        %1224 = vmatpush.xpose.msra.mxu0 %v1223
        %v1225 = vand.u32 %v354, 4294901760
        %1226 = vmatpush.xpose.msra.mxu0 %v1225
        %v1227 = vand.u32 %v351, 4294901760
        %1228 = vmatpush.xpose.msra.mxu0 %v1227
        %v1229 = vand.u32 %v348, 4294901760
        %1230 = vmatpush.xpose.msra.mxu0 %v1229
        %v1231 = vand.u32 %v345, 4294901760
        %1232 = vmatpush.xpose.msra.mxu0 %v1231
        %v1233 = vand.u32 %v342, 4294901760
        %1234 = vmatpush.xpose.msra.mxu0 %v1233
        %v1235 = vand.u32 %v339, 4294901760
        %1236 = vmatpush.xpose.msra.mxu0 %v1235
        %v1237 = vand.u32 %v282, 4294901760
        %1238 = vmatmul.f32.gmra.mxu0 %v1237
        %v1239 = vpop.f32.mrf.mxu0
        %v1240 = vadd.f32 %v1191, %v1239
        %v1241 = vand.u32 %v284, 4294901760
        %1242 = vmatmul.f32.gmra.mxu0 %v1241
        %v1243 = vpop.f32.mrf.mxu0
        %v1244 = vadd.f32 %v1195, %v1243
        %v1245 = vand.u32 %v286, 4294901760
        %1246 = vmatmul.f32.gmra.mxu0 %v1245
        %v1247 = vpop.f32.mrf.mxu0
        %v1248 = vadd.f32 %v1199, %v1247
        %v1249 = vand.u32 %v288, 4294901760
        %1250 = vmatmul.f32.gmra.mxu0 %v1249
        %v1251 = vpop.f32.mrf.mxu0
        %v1252 = vadd.f32 %v1203, %v1251
        %1253 = vdwg.mxu0
        %v1254 = vadd.f32 %v806, %v810
        %v1255 = vadd.f32 %v1254, %v814
        %v1256 = vadd.f32 %v1255, %v818
        %v1257 = vrot.slane %v1256, 4
        %v1258 = vadd.f32 %v1256, %v1257
        %v1259 = vrot.slane %v1258, 2
        %v1260 = vadd.f32 %v1258, %v1259
        %v1261 = vrot.slane %v1260, 1
        %v1262 = vadd.f32 %v1260, %v1261
        %v1263 = vadd.f32 %v1240, %v1244
        %v1264 = vadd.f32 %v1263, %v1248
        %v1265 = vadd.f32 %v1264, %v1252
        %v1266 = vrot.slane %v1265, 4
        %v1267 = vadd.f32 %v1265, %v1266
        %v1268 = vrot.slane %v1267, 2
        %v1269 = vadd.f32 %v1267, %v1268
        %v1270 = vrot.slane %v1269, 1
        %v1271 = vadd.f32 %v1269, %v1270
        %v1272 = vrcp.pop 32.0
        %v1273 = vmul.f32 32.0, %v1272
        %v1274 = vsub.f32 1.0, %v1273
        %v1275 = vmul.f32 %v1272, %v1274
        %v1276 = vadd.f32 %v1272, %v1275
        %vm1277 = vweird.f32 %v1272
        %v1278 = vsel %vm1277, %v1272, %v1276
        %v1279 = vmul.f32 %v1262, %v1278
        %v1280 = vmul.f32 %v1271, %v1278
        %v1281 = vsub.f32 %v806, %v1279
        %v1282 = vsub.f32 %v1240, %v1280
        %v1283 = vsub.f32 %v810, %v1279
        %v1284 = vsub.f32 %v1244, %v1280
        %v1285 = vsub.f32 %v814, %v1279
        %v1286 = vsub.f32 %v1248, %v1280
        %v1287 = vsub.f32 %v818, %v1279
        %v1288 = vsub.f32 %v1252, %v1280
        %v1289 = vmul.f32 %v1281, %v1281
        %v1290 = vmul.f32 %v1282, %v1282
        %v1291 = vmul.f32 %v1283, %v1283
        %v1292 = vmul.f32 %v1284, %v1284
        %v1293 = vmul.f32 %v1285, %v1285
        %v1294 = vmul.f32 %v1286, %v1286
        %v1295 = vmul.f32 %v1287, %v1287
        %v1296 = vmul.f32 %v1288, %v1288
        %v1297 = vadd.f32 %v1289, %v1291
        %v1298 = vadd.f32 %v1297, %v1293
        %v1299 = vadd.f32 %v1298, %v1295
        %v1300 = vrot.slane %v1299, 4
        %v1301 = vadd.f32 %v1299, %v1300
        %v1302 = vrot.slane %v1301, 2
        %v1303 = vadd.f32 %v1301, %v1302
        %v1304 = vrot.slane %v1303, 1
        %v1305 = vadd.f32 %v1303, %v1304
        %v1306 = vadd.f32 %v1290, %v1292
        %v1307 = vadd.f32 %v1306, %v1294
        %v1308 = vadd.f32 %v1307, %v1296
        %v1309 = vrot.slane %v1308, 4
        %v1310 = vadd.f32 %v1308, %v1309
        %v1311 = vrot.slane %v1310, 2
        %v1312 = vadd.f32 %v1310, %v1311
        %v1313 = vrot.slane %v1312, 1
        %v1314 = vadd.f32 %v1312, %v1313
        %v1315 = vmul.f32 %v1305, %v1278
        %v1316 = vmul.f32 %v1314, %v1278
        %v1317 = vadd.f32 %v1315, 1e-05
        %v1318 = vadd.f32 %v1316, 1e-05
        %v1319 = vrsqrt.pop %v1317
        %v1320 = vmul.f32 %v1319, %v1317
        %v1321 = vmul.f32 %v1320, %v1319
        %v1322 = vmul.f32 0.5, %v1321
        %v1323 = vsub.f32 1.5, %v1322
        %v1324 = vmul.f32 %v1319, %v1323
        %vm1325 = vweird.f32 %v1317
        %vm1326 = vweird.f32 %v1319
        %vm1327 = vmor %vm1325, %vm1326
        %v1328 = vsel %vm1327, %v1319, %v1324
        %v1329 = vrsqrt.pop %v1318
        %v1330 = vmul.f32 %v1329, %v1318
        %v1331 = vmul.f32 %v1330, %v1329
        %v1332 = vmul.f32 0.5, %v1331
        %v1333 = vsub.f32 1.5, %v1332
        %v1334 = vmul.f32 %v1329, %v1333
        %vm1335 = vweird.f32 %v1318
        %vm1336 = vweird.f32 %v1329
        %vm1337 = vmor %vm1335, %vm1336
        %v1338 = vsel %vm1337, %v1329, %v1334
        %v1339 = vmul.f32 %v1281, %v1328
        %v1340 = vmul.f32 %v1282, %v1338
        %v1341 = vmul.f32 %v1283, %v1328
        %v1342 = vmul.f32 %v1284, %v1338
        %v1343 = vmul.f32 %v1285, %v1328
        %v1344 = vmul.f32 %v1286, %v1338
        %v1345 = vmul.f32 %v1287, %v1328
        %v1346 = vmul.f32 %v1288, %v1338
        %1347 = vset.pattern.permute.xlu0 9
        %1348 = vperm.xlu0 %1347, %v255
        %v1349 = vpop.permute.xlu0 %1348
        %1351 = vset.pattern.permute.xlu0 9
        %1352 = vperm.xlu0 %1351, %v256
        %v1353 = vpop.permute.xlu0 %1352
        %1355 = vset.pattern.permute.xlu0 9
        %1356 = vperm.xlu0 %1355, %v257
        %v1357 = vpop.permute.xlu0 %1356
        %1359 = vset.pattern.permute.xlu0 9
        %1360 = vperm.xlu0 %1359, %v258
        %v1361 = vpop.permute.xlu0 %1360
        %v1363 = vmul.f32 %v1339, %v1349
        %v1364 = vmul.f32 %v1340, %v1349
        %v1365 = vmul.f32 %v1341, %v1353
        %v1366 = vmul.f32 %v1342, %v1353
        %v1367 = vmul.f32 %v1343, %v1357
        %v1368 = vmul.f32 %v1344, %v1357
        %v1369 = vmul.f32 %v1345, %v1361
        %v1370 = vmul.f32 %v1346, %v1361
        %1371 = vset.pattern.permute.xlu0 10
        %1372 = vperm.xlu0 %1371, %v255
        %v1373 = vpop.permute.xlu0 %1372
        %1375 = vset.pattern.permute.xlu0 10
        %1376 = vperm.xlu0 %1375, %v256
        %v1377 = vpop.permute.xlu0 %1376
        %1379 = vset.pattern.permute.xlu0 10
        %1380 = vperm.xlu0 %1379, %v257
        %v1381 = vpop.permute.xlu0 %1380
        %1383 = vset.pattern.permute.xlu0 10
        %1384 = vperm.xlu0 %1383, %v258
        %v1385 = vpop.permute.xlu0 %1384
        %v1387 = vadd.f32 %v1363, %v1373
        %v1388 = vadd.f32 %v1364, %v1373
        %v1389 = vadd.f32 %v1365, %v1377
        %v1390 = vadd.f32 %v1366, %v1377
        %v1391 = vadd.f32 %v1367, %v1381
        %v1392 = vadd.f32 %v1368, %v1381
        %v1393 = vadd.f32 %v1369, %v1385
        %v1394 = vadd.f32 %v1370, %v1385
        %vm1395 = vcmp.ge.f32.partialorder %v1387, 0.0
        %vm1396 = vcmp.ge.f32.partialorder %v1388, 0.0
        %vm1397 = vcmp.ge.f32.partialorder %v1389, 0.0
        %vm1398 = vcmp.ge.f32.partialorder %v1390, 0.0
        %vm1399 = vcmp.ge.f32.partialorder %v1391, 0.0
        %vm1400 = vcmp.ge.f32.partialorder %v1392, 0.0
        %vm1401 = vcmp.ge.f32.partialorder %v1393, 0.0
        %vm1402 = vcmp.ge.f32.partialorder %v1394, 0.0
        %v1403 = vmul.f32 %v1387, 0.01
        %v1404 = vmul.f32 %v1388, 0.01
        %v1405 = vmul.f32 %v1389, 0.01
        %v1406 = vmul.f32 %v1390, 0.01
        %v1407 = vmul.f32 %v1391, 0.01
        %v1408 = vmul.f32 %v1392, 0.01
        %v1409 = vmul.f32 %v1393, 0.01
        %v1410 = vmul.f32 %v1394, 0.01
        %v1411 = vsel %vm1395, %v1387, %v1403
        %v1412 = vsel %vm1396, %v1388, %v1404
        %v1413 = vsel %vm1397, %v1389, %v1405
        %v1414 = vsel %vm1398, %v1390, %v1406
        %v1415 = vsel %vm1399, %v1391, %v1407
        %v1416 = vsel %vm1400, %v1392, %v1408
        %v1417 = vsel %vm1401, %v1393, %v1409
        %v1418 = vsel %vm1402, %v1394, %v1410
        %1420 = vset.pattern.permute.xlu0 32
        %1421 = vperm.xlu0 %1420, %v259
        %v1422 = vpop.permute.xlu0 %1421
        %1425 = vset.pattern.permute.xlu0 32
        %1426 = vperm.xlu0 %1425, %v260
        %v1427 = vpop.permute.xlu0 %1426
        %vm1429 = vcmask 261120
        %v1430 = vsel %vm1429, %v259, 0
        %v1432 = vsel %vm1429, %v260, 0
        %1434 = vmatpush.msra.mxu0 0.0
        %1435 = vmatpush.msra.mxu0 0.0
        %1436 = vmatpush.msra.mxu0 0.0
        %1437 = vmatpush.msra.mxu0 0.0
        %1438 = vmatpush.msra.mxu0 0.0
        %1439 = vmatpush.msra.mxu0 0.0
        %1440 = vmatpush.msra.mxu0 0.0
        %1441 = vmatpush.msra.mxu0 0.0
        %1442 = vmatpush.msra.mxu0 0.0
        %1443 = vmatpush.msra.mxu0 0.0
        %1444 = vmatpush.msra.mxu0 0.0
        %1445 = vmatpush.msra.mxu0 0.0
        %v1446 = vand.u32 %v1417, 4294901760
        %1447 = vmatpush.msra.mxu0 %v1446
        %v1448 = vand.u32 %v1415, 4294901760
        %1449 = vmatpush.msra.mxu0 %v1448
        %v1450 = vand.u32 %v1413, 4294901760
        %1451 = vmatpush.msra.mxu0 %v1450
        %v1452 = vand.u32 %v1411, 4294901760
        %1453 = vmatpush.msra.mxu0 %v1452
        %v1454 = vand.u32 %v1430, 4294901760
        %v1455 = vsub.f32 %v1430, %v1454
        %v1456 = vand.u32 %v1455, 4294901760
        %v1457 = vsub.f32 %v1455, %v1456
        %v1458 = vand.u32 %v1457, 4294901760
        %1459 = vmatmul.f32.gmra.mxu0 %v1458
        %v1460 = vpop.f32.mrf.mxu0
        %v1461 = vadd.f32 %v1422, %v1460
        %v1462 = vand.u32 %v1432, 4294901760
        %v1463 = vsub.f32 %v1432, %v1462
        %v1464 = vand.u32 %v1463, 4294901760
        %v1465 = vsub.f32 %v1463, %v1464
        %v1466 = vand.u32 %v1465, 4294901760
        %1467 = vmatmul.f32.gmra.mxu0 %v1466
        %v1468 = vpop.f32.mrf.mxu0
        %v1469 = vadd.f32 %v1427, %v1468
        %1470 = vdwg.mxu0
        %1471 = vmatpush.msra.mxu0 0.0
        %1472 = vmatpush.msra.mxu0 0.0
        %1473 = vmatpush.msra.mxu0 0.0
        %1474 = vmatpush.msra.mxu0 0.0
        %1475 = vmatpush.msra.mxu0 0.0
        %1476 = vmatpush.msra.mxu0 0.0
        %1477 = vmatpush.msra.mxu0 0.0
        %1478 = vmatpush.msra.mxu0 0.0
        %1479 = vmatpush.msra.mxu0 0.0
        %1480 = vmatpush.msra.mxu0 0.0
        %1481 = vmatpush.msra.mxu0 0.0
        %1482 = vmatpush.msra.mxu0 0.0
        %v1483 = vand.u32 %v1417, 4294901760
        %v1484 = vsub.f32 %v1417, %v1483
        %v1485 = vand.u32 %v1484, 4294901760
        %v1486 = vsub.f32 %v1484, %v1485
        %v1487 = vand.u32 %v1486, 4294901760
        %1488 = vmatpush.msra.mxu0 %v1487
        %v1489 = vand.u32 %v1415, 4294901760
        %v1490 = vsub.f32 %v1415, %v1489
        %v1491 = vand.u32 %v1490, 4294901760
        %v1492 = vsub.f32 %v1490, %v1491
        %v1493 = vand.u32 %v1492, 4294901760
        %1494 = vmatpush.msra.mxu0 %v1493
        %v1495 = vand.u32 %v1413, 4294901760
        %v1496 = vsub.f32 %v1413, %v1495
        %v1497 = vand.u32 %v1496, 4294901760
        %v1498 = vsub.f32 %v1496, %v1497
        %v1499 = vand.u32 %v1498, 4294901760
        %1500 = vmatpush.msra.mxu0 %v1499
        %v1501 = vand.u32 %v1411, 4294901760
        %v1502 = vsub.f32 %v1411, %v1501
        %v1503 = vand.u32 %v1502, 4294901760
        %v1504 = vsub.f32 %v1502, %v1503
        %v1505 = vand.u32 %v1504, 4294901760
        %1506 = vmatpush.msra.mxu0 %v1505
        %v1507 = vand.u32 %v1430, 4294901760
        %1508 = vmatmul.f32.gmra.mxu0 %v1507
        %v1509 = vpop.f32.mrf.mxu0
        %v1510 = vadd.f32 %v1461, %v1509
        %v1511 = vand.u32 %v1432, 4294901760
        %1512 = vmatmul.f32.gmra.mxu0 %v1511
        %v1513 = vpop.f32.mrf.mxu0
        %v1514 = vadd.f32 %v1469, %v1513
        %1515 = vdwg.mxu0
        %1516 = vmatpush.msra.mxu0 0.0
        %1517 = vmatpush.msra.mxu0 0.0
        %1518 = vmatpush.msra.mxu0 0.0
        %1519 = vmatpush.msra.mxu0 0.0
        %1520 = vmatpush.msra.mxu0 0.0
        %1521 = vmatpush.msra.mxu0 0.0
        %1522 = vmatpush.msra.mxu0 0.0
        %1523 = vmatpush.msra.mxu0 0.0
        %1524 = vmatpush.msra.mxu0 0.0
        %1525 = vmatpush.msra.mxu0 0.0
        %1526 = vmatpush.msra.mxu0 0.0
        %1527 = vmatpush.msra.mxu0 0.0
        %v1528 = vand.u32 %v1417, 4294901760
        %v1529 = vsub.f32 %v1417, %v1528
        %1530 = vmatpush.msra.mxu0 %v1529
        %v1531 = vand.u32 %v1415, 4294901760
        %v1532 = vsub.f32 %v1415, %v1531
        %1533 = vmatpush.msra.mxu0 %v1532
        %v1534 = vand.u32 %v1413, 4294901760
        %v1535 = vsub.f32 %v1413, %v1534
        %1536 = vmatpush.msra.mxu0 %v1535
        %v1537 = vand.u32 %v1411, 4294901760
        %v1538 = vsub.f32 %v1411, %v1537
        %1539 = vmatpush.msra.mxu0 %v1538
        %v1540 = vand.u32 %v1430, 4294901760
        %v1541 = vsub.f32 %v1430, %v1540
        %1542 = vmatmul.f32.gmra.mxu0 %v1541
        %v1543 = vpop.f32.mrf.mxu0
        %v1544 = vadd.f32 %v1510, %v1543
        %v1545 = vand.u32 %v1432, 4294901760
        %v1546 = vsub.f32 %v1432, %v1545
        %1547 = vmatmul.f32.gmra.mxu0 %v1546
        %v1548 = vpop.f32.mrf.mxu0
        %v1549 = vadd.f32 %v1514, %v1548
        %1550 = vdwg.mxu0
        %1551 = vmatpush.msra.mxu0 0.0
        %1552 = vmatpush.msra.mxu0 0.0
        %1553 = vmatpush.msra.mxu0 0.0
        %1554 = vmatpush.msra.mxu0 0.0
        %1555 = vmatpush.msra.mxu0 0.0
        %1556 = vmatpush.msra.mxu0 0.0
        %1557 = vmatpush.msra.mxu0 0.0
        %1558 = vmatpush.msra.mxu0 0.0
        %1559 = vmatpush.msra.mxu0 0.0
        %1560 = vmatpush.msra.mxu0 0.0
        %1561 = vmatpush.msra.mxu0 0.0
        %1562 = vmatpush.msra.mxu0 0.0
        %v1563 = vand.u32 %v1417, 4294901760
        %1564 = vmatpush.msra.mxu0 %v1563
        %v1565 = vand.u32 %v1415, 4294901760
        %1566 = vmatpush.msra.mxu0 %v1565
        %v1567 = vand.u32 %v1413, 4294901760
        %1568 = vmatpush.msra.mxu0 %v1567
        %v1569 = vand.u32 %v1411, 4294901760
        %1570 = vmatpush.msra.mxu0 %v1569
        %v1571 = vand.u32 %v1430, 4294901760
        %v1572 = vsub.f32 %v1430, %v1571
        %v1573 = vand.u32 %v1572, 4294901760
        %1574 = vmatmul.f32.gmra.mxu0 %v1573
        %v1575 = vpop.f32.mrf.mxu0
        %v1576 = vadd.f32 %v1544, %v1575
        %v1577 = vand.u32 %v1432, 4294901760
        %v1578 = vsub.f32 %v1432, %v1577
        %v1579 = vand.u32 %v1578, 4294901760
        %1580 = vmatmul.f32.gmra.mxu0 %v1579
        %v1581 = vpop.f32.mrf.mxu0
        %v1582 = vadd.f32 %v1549, %v1581
        %1583 = vdwg.mxu0
        %1584 = vmatpush.msra.mxu0 0.0
        %1585 = vmatpush.msra.mxu0 0.0
        %1586 = vmatpush.msra.mxu0 0.0
        %1587 = vmatpush.msra.mxu0 0.0
        %1588 = vmatpush.msra.mxu0 0.0
        %1589 = vmatpush.msra.mxu0 0.0
        %1590 = vmatpush.msra.mxu0 0.0
        %1591 = vmatpush.msra.mxu0 0.0
        %1592 = vmatpush.msra.mxu0 0.0
        %1593 = vmatpush.msra.mxu0 0.0
        %1594 = vmatpush.msra.mxu0 0.0
        %1595 = vmatpush.msra.mxu0 0.0
        %v1596 = vand.u32 %v1417, 4294901760
        %v1597 = vsub.f32 %v1417, %v1596
        %v1598 = vand.u32 %v1597, 4294901760
        %1599 = vmatpush.msra.mxu0 %v1598
        %v1600 = vand.u32 %v1415, 4294901760
        %v1601 = vsub.f32 %v1415, %v1600
        %v1602 = vand.u32 %v1601, 4294901760
        %1603 = vmatpush.msra.mxu0 %v1602
        %v1604 = vand.u32 %v1413, 4294901760
        %v1605 = vsub.f32 %v1413, %v1604
        %v1606 = vand.u32 %v1605, 4294901760
        %1607 = vmatpush.msra.mxu0 %v1606
        %v1608 = vand.u32 %v1411, 4294901760
        %v1609 = vsub.f32 %v1411, %v1608
        %v1610 = vand.u32 %v1609, 4294901760
        %1611 = vmatpush.msra.mxu0 %v1610
        %v1612 = vand.u32 %v1430, 4294901760
        %1613 = vmatmul.f32.gmra.mxu0 %v1612
        %v1614 = vpop.f32.mrf.mxu0
        %v1615 = vadd.f32 %v1576, %v1614
        %v1616 = vand.u32 %v1432, 4294901760
        %1617 = vmatmul.f32.gmra.mxu0 %v1616
        %v1618 = vpop.f32.mrf.mxu0
        %v1619 = vadd.f32 %v1582, %v1618
        %1620 = vdwg.mxu0
        %1621 = vmatpush.msra.mxu0 0.0
        %1622 = vmatpush.msra.mxu0 0.0
        %1623 = vmatpush.msra.mxu0 0.0
        %1624 = vmatpush.msra.mxu0 0.0
        %1625 = vmatpush.msra.mxu0 0.0
        %1626 = vmatpush.msra.mxu0 0.0
        %1627 = vmatpush.msra.mxu0 0.0
        %1628 = vmatpush.msra.mxu0 0.0
        %1629 = vmatpush.msra.mxu0 0.0
        %1630 = vmatpush.msra.mxu0 0.0
        %1631 = vmatpush.msra.mxu0 0.0
        %1632 = vmatpush.msra.mxu0 0.0
        %v1633 = vand.u32 %v1417, 4294901760
        %1634 = vmatpush.msra.mxu0 %v1633
        %v1635 = vand.u32 %v1415, 4294901760
        %1636 = vmatpush.msra.mxu0 %v1635
        %v1637 = vand.u32 %v1413, 4294901760
        %1638 = vmatpush.msra.mxu0 %v1637
        %v1639 = vand.u32 %v1411, 4294901760
        %1640 = vmatpush.msra.mxu0 %v1639
        %v1641 = vand.u32 %v1430, 4294901760
        %1642 = vmatmul.f32.gmra.mxu0 %v1641
        %v1643 = vpop.f32.mrf.mxu0
        %v1644 = vadd.f32 %v1615, %v1643
        %v1645 = vand.u32 %v1432, 4294901760
        %1646 = vmatmul.f32.gmra.mxu0 %v1645
        %v1647 = vpop.f32.mrf.mxu0
        %v1648 = vadd.f32 %v1619, %v1647
        %1649 = vdwg.mxu0
        %1650 = vmatpush.msra.mxu0 0.0
        %1651 = vmatpush.msra.mxu0 0.0
        %1652 = vmatpush.msra.mxu0 0.0
        %1653 = vmatpush.msra.mxu0 0.0
        %1654 = vmatpush.msra.mxu0 0.0
        %1655 = vmatpush.msra.mxu0 0.0
        %1656 = vmatpush.msra.mxu0 0.0
        %1657 = vmatpush.msra.mxu0 0.0
        %1658 = vmatpush.msra.mxu0 0.0
        %1659 = vmatpush.msra.mxu0 0.0
        %1660 = vmatpush.msra.mxu0 0.0
        %1661 = vmatpush.msra.mxu0 0.0
        %v1662 = vand.u32 %v1418, 4294901760
        %1663 = vmatpush.msra.mxu0 %v1662
        %v1664 = vand.u32 %v1416, 4294901760
        %1665 = vmatpush.msra.mxu0 %v1664
        %v1666 = vand.u32 %v1414, 4294901760
        %1667 = vmatpush.msra.mxu0 %v1666
        %v1668 = vand.u32 %v1412, 4294901760
        %1669 = vmatpush.msra.mxu0 %v1668
        %v1670 = vand.u32 %v1430, 4294901760
        %v1671 = vsub.f32 %v1430, %v1670
        %v1672 = vand.u32 %v1671, 4294901760
        %v1673 = vsub.f32 %v1671, %v1672
        %v1674 = vand.u32 %v1673, 4294901760
        %1675 = vmatmul.f32.gmra.mxu0 %v1674
        %v1676 = vpop.f32.mrf.mxu0
        %v1677 = vadd.f32 %v1422, %v1676
        %v1678 = vand.u32 %v1432, 4294901760
        %v1679 = vsub.f32 %v1432, %v1678
        %v1680 = vand.u32 %v1679, 4294901760
        %v1681 = vsub.f32 %v1679, %v1680
        %v1682 = vand.u32 %v1681, 4294901760
        %1683 = vmatmul.f32.gmra.mxu0 %v1682
        %v1684 = vpop.f32.mrf.mxu0
        %v1685 = vadd.f32 %v1427, %v1684
        %1686 = vdwg.mxu0
        %1687 = vmatpush.msra.mxu0 0.0
        %1688 = vmatpush.msra.mxu0 0.0
        %1689 = vmatpush.msra.mxu0 0.0
        %1690 = vmatpush.msra.mxu0 0.0
        %1691 = vmatpush.msra.mxu0 0.0
        %1692 = vmatpush.msra.mxu0 0.0
        %1693 = vmatpush.msra.mxu0 0.0
        %1694 = vmatpush.msra.mxu0 0.0
        %1695 = vmatpush.msra.mxu0 0.0
        %1696 = vmatpush.msra.mxu0 0.0
        %1697 = vmatpush.msra.mxu0 0.0
        %1698 = vmatpush.msra.mxu0 0.0
        %v1699 = vand.u32 %v1418, 4294901760
        %v1700 = vsub.f32 %v1418, %v1699
        %v1701 = vand.u32 %v1700, 4294901760
        %v1702 = vsub.f32 %v1700, %v1701
        %v1703 = vand.u32 %v1702, 4294901760
        %1704 = vmatpush.msra.mxu0 %v1703
        %v1705 = vand.u32 %v1416, 4294901760
        %v1706 = vsub.f32 %v1416, %v1705
        %v1707 = vand.u32 %v1706, 4294901760
        %v1708 = vsub.f32 %v1706, %v1707
        %v1709 = vand.u32 %v1708, 4294901760
        %1710 = vmatpush.msra.mxu0 %v1709
        %v1711 = vand.u32 %v1414, 4294901760
        %v1712 = vsub.f32 %v1414, %v1711
        %v1713 = vand.u32 %v1712, 4294901760
        %v1714 = vsub.f32 %v1712, %v1713
        %v1715 = vand.u32 %v1714, 4294901760
        %1716 = vmatpush.msra.mxu0 %v1715
        %v1717 = vand.u32 %v1412, 4294901760
        %v1718 = vsub.f32 %v1412, %v1717
        %v1719 = vand.u32 %v1718, 4294901760
        %v1720 = vsub.f32 %v1718, %v1719
        %v1721 = vand.u32 %v1720, 4294901760
        %1722 = vmatpush.msra.mxu0 %v1721
        %v1723 = vand.u32 %v1430, 4294901760
        %1724 = vmatmul.f32.gmra.mxu0 %v1723
        %v1725 = vpop.f32.mrf.mxu0
        %v1726 = vadd.f32 %v1677, %v1725
        %v1727 = vand.u32 %v1432, 4294901760
        %1728 = vmatmul.f32.gmra.mxu0 %v1727
        %v1729 = vpop.f32.mrf.mxu0
        %v1730 = vadd.f32 %v1685, %v1729
        %1731 = vdwg.mxu0
        %1732 = vmatpush.msra.mxu0 0.0
        %1733 = vmatpush.msra.mxu0 0.0
        %1734 = vmatpush.msra.mxu0 0.0
        %1735 = vmatpush.msra.mxu0 0.0
        %1736 = vmatpush.msra.mxu0 0.0
        %1737 = vmatpush.msra.mxu0 0.0
        %1738 = vmatpush.msra.mxu0 0.0
        %1739 = vmatpush.msra.mxu0 0.0
        %1740 = vmatpush.msra.mxu0 0.0
        %1741 = vmatpush.msra.mxu0 0.0
        %1742 = vmatpush.msra.mxu0 0.0
        %1743 = vmatpush.msra.mxu0 0.0
        %v1744 = vand.u32 %v1418, 4294901760
        %v1745 = vsub.f32 %v1418, %v1744
        %1746 = vmatpush.msra.mxu0 %v1745
        %v1747 = vand.u32 %v1416, 4294901760
        %v1748 = vsub.f32 %v1416, %v1747
        %1749 = vmatpush.msra.mxu0 %v1748
        %v1750 = vand.u32 %v1414, 4294901760
        %v1751 = vsub.f32 %v1414, %v1750
        %1752 = vmatpush.msra.mxu0 %v1751
        %v1753 = vand.u32 %v1412, 4294901760
        %v1754 = vsub.f32 %v1412, %v1753
        %1755 = vmatpush.msra.mxu0 %v1754
        %v1756 = vand.u32 %v1430, 4294901760
        %v1757 = vsub.f32 %v1430, %v1756
        %1758 = vmatmul.f32.gmra.mxu0 %v1757
        %v1759 = vpop.f32.mrf.mxu0
        %v1760 = vadd.f32 %v1726, %v1759
        %v1761 = vand.u32 %v1432, 4294901760
        %v1762 = vsub.f32 %v1432, %v1761
        %1763 = vmatmul.f32.gmra.mxu0 %v1762
        %v1764 = vpop.f32.mrf.mxu0
        %v1765 = vadd.f32 %v1730, %v1764
        %1766 = vdwg.mxu0
        %1767 = vmatpush.msra.mxu0 0.0
        %1768 = vmatpush.msra.mxu0 0.0
        %1769 = vmatpush.msra.mxu0 0.0
        %1770 = vmatpush.msra.mxu0 0.0
        %1771 = vmatpush.msra.mxu0 0.0
        %1772 = vmatpush.msra.mxu0 0.0
        %1773 = vmatpush.msra.mxu0 0.0
        %1774 = vmatpush.msra.mxu0 0.0
        %1775 = vmatpush.msra.mxu0 0.0
        %1776 = vmatpush.msra.mxu0 0.0
        %1777 = vmatpush.msra.mxu0 0.0
        %1778 = vmatpush.msra.mxu0 0.0
        %v1779 = vand.u32 %v1418, 4294901760
        %1780 = vmatpush.msra.mxu0 %v1779
        %v1781 = vand.u32 %v1416, 4294901760
        %1782 = vmatpush.msra.mxu0 %v1781
        %v1783 = vand.u32 %v1414, 4294901760
        %1784 = vmatpush.msra.mxu0 %v1783
        %v1785 = vand.u32 %v1412, 4294901760
        %1786 = vmatpush.msra.mxu0 %v1785
        %v1787 = vand.u32 %v1430, 4294901760
        %v1788 = vsub.f32 %v1430, %v1787
        %v1789 = vand.u32 %v1788, 4294901760
        %1790 = vmatmul.f32.gmra.mxu0 %v1789
        %v1791 = vpop.f32.mrf.mxu0
        %v1792 = vadd.f32 %v1760, %v1791
        %v1793 = vand.u32 %v1432, 4294901760
        %v1794 = vsub.f32 %v1432, %v1793
        %v1795 = vand.u32 %v1794, 4294901760
        %1796 = vmatmul.f32.gmra.mxu0 %v1795
        %v1797 = vpop.f32.mrf.mxu0
        %v1798 = vadd.f32 %v1765, %v1797
        %1799 = vdwg.mxu0
        %1800 = vmatpush.msra.mxu0 0.0
        %1801 = vmatpush.msra.mxu0 0.0
        %1802 = vmatpush.msra.mxu0 0.0
        %1803 = vmatpush.msra.mxu0 0.0
        %1804 = vmatpush.msra.mxu0 0.0
        %1805 = vmatpush.msra.mxu0 0.0
        %1806 = vmatpush.msra.mxu0 0.0
        %1807 = vmatpush.msra.mxu0 0.0
        %1808 = vmatpush.msra.mxu0 0.0
        %1809 = vmatpush.msra.mxu0 0.0
        %1810 = vmatpush.msra.mxu0 0.0
        %1811 = vmatpush.msra.mxu0 0.0
        %v1812 = vand.u32 %v1418, 4294901760
        %v1813 = vsub.f32 %v1418, %v1812
        %v1814 = vand.u32 %v1813, 4294901760
        %1815 = vmatpush.msra.mxu0 %v1814
        %v1816 = vand.u32 %v1416, 4294901760
        %v1817 = vsub.f32 %v1416, %v1816
        %v1818 = vand.u32 %v1817, 4294901760
        %1819 = vmatpush.msra.mxu0 %v1818
        %v1820 = vand.u32 %v1414, 4294901760
        %v1821 = vsub.f32 %v1414, %v1820
        %v1822 = vand.u32 %v1821, 4294901760
        %1823 = vmatpush.msra.mxu0 %v1822
        %v1824 = vand.u32 %v1412, 4294901760
        %v1825 = vsub.f32 %v1412, %v1824
        %v1826 = vand.u32 %v1825, 4294901760
        %1827 = vmatpush.msra.mxu0 %v1826
        %v1828 = vand.u32 %v1430, 4294901760
        %1829 = vmatmul.f32.gmra.mxu0 %v1828
        %v1830 = vpop.f32.mrf.mxu0
        %v1831 = vadd.f32 %v1792, %v1830
        %v1832 = vand.u32 %v1432, 4294901760
        %1833 = vmatmul.f32.gmra.mxu0 %v1832
        %v1834 = vpop.f32.mrf.mxu0
        %v1835 = vadd.f32 %v1798, %v1834
        %1836 = vdwg.mxu0
        %1837 = vmatpush.msra.mxu0 0.0
        %1838 = vmatpush.msra.mxu0 0.0
        %1839 = vmatpush.msra.mxu0 0.0
        %1840 = vmatpush.msra.mxu0 0.0
        %1841 = vmatpush.msra.mxu0 0.0
        %1842 = vmatpush.msra.mxu0 0.0
        %1843 = vmatpush.msra.mxu0 0.0
        %1844 = vmatpush.msra.mxu0 0.0
        %1845 = vmatpush.msra.mxu0 0.0
        %1846 = vmatpush.msra.mxu0 0.0
        %1847 = vmatpush.msra.mxu0 0.0
        %1848 = vmatpush.msra.mxu0 0.0
        %v1849 = vand.u32 %v1418, 4294901760
        %1850 = vmatpush.msra.mxu0 %v1849
        %v1851 = vand.u32 %v1416, 4294901760
        %1852 = vmatpush.msra.mxu0 %v1851
        %v1853 = vand.u32 %v1414, 4294901760
        %1854 = vmatpush.msra.mxu0 %v1853
        %v1855 = vand.u32 %v1412, 4294901760
        %1856 = vmatpush.msra.mxu0 %v1855
        %v1857 = vand.u32 %v1430, 4294901760
        %1858 = vmatmul.f32.gmra.mxu0 %v1857
        %v1859 = vpop.f32.mrf.mxu0
        %v1860 = vadd.f32 %v1831, %v1859
        %v1861 = vand.u32 %v1432, 4294901760
        %1862 = vmatmul.f32.gmra.mxu0 %v1861
        %v1863 = vpop.f32.mrf.mxu0
        %v1864 = vadd.f32 %v1835, %v1863
        %1865 = vdwg.mxu0
        %v1866 = vadd.f32 %v1644, %v1648
        %v1867 = vrot.slane %v1866, 4
        %v1868 = vadd.f32 %v1866, %v1867
        %v1869 = vrot.slane %v1868, 2
        %v1870 = vadd.f32 %v1868, %v1869
        %v1871 = vrot.slane %v1870, 1
        %v1872 = vadd.f32 %v1870, %v1871
        %v1873 = vadd.f32 %v1860, %v1864
        %v1874 = vrot.slane %v1873, 4
        %v1875 = vadd.f32 %v1873, %v1874
        %v1876 = vrot.slane %v1875, 2
        %v1877 = vadd.f32 %v1875, %v1876
        %v1878 = vrot.slane %v1877, 1
        %v1879 = vadd.f32 %v1877, %v1878
        %v1880 = vrcp.pop 16.0
        %v1881 = vmul.f32 16.0, %v1880
        %v1882 = vsub.f32 1.0, %v1881
        %v1883 = vmul.f32 %v1880, %v1882
        %v1884 = vadd.f32 %v1880, %v1883
        %vm1885 = vweird.f32 %v1880
        %v1886 = vsel %vm1885, %v1880, %v1884
        %v1887 = vmul.f32 %v1872, %v1886
        %v1888 = vmul.f32 %v1879, %v1886
        %v1889 = vsub.f32 %v1644, %v1887
        %v1890 = vsub.f32 %v1860, %v1888
        %v1891 = vsub.f32 %v1648, %v1887
        %v1892 = vsub.f32 %v1864, %v1888
        %v1893 = vmul.f32 %v1889, %v1889
        %v1894 = vmul.f32 %v1890, %v1890
        %v1895 = vmul.f32 %v1891, %v1891
        %v1896 = vmul.f32 %v1892, %v1892
        %v1897 = vadd.f32 %v1893, %v1895
        %v1898 = vrot.slane %v1897, 4
        %v1899 = vadd.f32 %v1897, %v1898
        %v1900 = vrot.slane %v1899, 2
        %v1901 = vadd.f32 %v1899, %v1900
        %v1902 = vrot.slane %v1901, 1
        %v1903 = vadd.f32 %v1901, %v1902
        %v1904 = vadd.f32 %v1894, %v1896
        %v1905 = vrot.slane %v1904, 4
        %v1906 = vadd.f32 %v1904, %v1905
        %v1907 = vrot.slane %v1906, 2
        %v1908 = vadd.f32 %v1906, %v1907
        %v1909 = vrot.slane %v1908, 1
        %v1910 = vadd.f32 %v1908, %v1909
        %v1911 = vmul.f32 %v1903, %v1886
        %v1912 = vmul.f32 %v1910, %v1886
        %v1913 = vadd.f32 %v1911, 1e-05
        %v1914 = vadd.f32 %v1912, 1e-05
        %v1915 = vrsqrt.pop %v1913
        %v1916 = vmul.f32 %v1915, %v1913
        %v1917 = vmul.f32 %v1916, %v1915
        %v1918 = vmul.f32 0.5, %v1917
        %v1919 = vsub.f32 1.5, %v1918
        %v1920 = vmul.f32 %v1915, %v1919
        %vm1921 = vweird.f32 %v1913
        %vm1922 = vweird.f32 %v1915
        %vm1923 = vmor %vm1921, %vm1922
        %v1924 = vsel %vm1923, %v1915, %v1920
        %v1925 = vrsqrt.pop %v1914
        %v1926 = vmul.f32 %v1925, %v1914
        %v1927 = vmul.f32 %v1926, %v1925
        %v1928 = vmul.f32 0.5, %v1927
        %v1929 = vsub.f32 1.5, %v1928
        %v1930 = vmul.f32 %v1925, %v1929
        %vm1931 = vweird.f32 %v1914
        %vm1932 = vweird.f32 %v1925
        %vm1933 = vmor %vm1931, %vm1932
        %v1934 = vsel %vm1933, %v1925, %v1930
        %v1935 = vmul.f32 %v1889, %v1924
        %v1936 = vmul.f32 %v1890, %v1934
        %v1937 = vmul.f32 %v1891, %v1924
        %v1938 = vmul.f32 %v1892, %v1934
        %1939 = vset.pattern.permute.xlu0 33
        %1940 = vperm.xlu0 %1939, %v259
        %v1941 = vpop.permute.xlu0 %1940
        %1943 = vset.pattern.permute.xlu0 33
        %1944 = vperm.xlu0 %1943, %v260
        %v1945 = vpop.permute.xlu0 %1944
        %v1947 = vmul.f32 %v1935, %v1941
        %v1948 = vmul.f32 %v1936, %v1941
        %v1949 = vmul.f32 %v1937, %v1945
        %v1950 = vmul.f32 %v1938, %v1945
        %1951 = vset.pattern.permute.xlu0 34
        %1952 = vperm.xlu0 %1951, %v259
        %v1953 = vpop.permute.xlu0 %1952
        %1955 = vset.pattern.permute.xlu0 34
        %1956 = vperm.xlu0 %1955, %v260
        %v1957 = vpop.permute.xlu0 %1956
        %v1959 = vadd.f32 %v1947, %v1953
        %v1960 = vadd.f32 %v1948, %v1953
        %v1961 = vadd.f32 %v1949, %v1957
        %v1962 = vadd.f32 %v1950, %v1957
        %vm1963 = vcmp.ge.f32.partialorder %v1959, 0.0
        %vm1964 = vcmp.ge.f32.partialorder %v1960, 0.0
        %vm1965 = vcmp.ge.f32.partialorder %v1961, 0.0
        %vm1966 = vcmp.ge.f32.partialorder %v1962, 0.0
        %v1967 = vmul.f32 %v1959, 0.01
        %v1968 = vmul.f32 %v1960, 0.01
        %v1969 = vmul.f32 %v1961, 0.01
        %v1970 = vmul.f32 %v1962, 0.01
        %v1971 = vsel %vm1963, %v1959, %v1967
        %v1972 = vsel %vm1964, %v1960, %v1968
        %v1973 = vsel %vm1965, %v1961, %v1969
        %v1974 = vsel %vm1966, %v1962, %v1970
        %1975 = vset.pattern.permute.xlu0 35
        %1976 = vperm.xlu0 %1975, %v259
        %v1977 = vpop.permute.xlu0 %1976
        %1979 = vset.pattern.permute.xlu0 35
        %1980 = vperm.xlu0 %1979, %v260
        %v1981 = vpop.permute.xlu0 %1980
        %v1983 = vmul.f32 %v1977, %v1971
        %v1984 = vmul.f32 %v1977, %v1972
        %v1985 = vmul.f32 %v1981, %v1973
        %v1986 = vmul.f32 %v1981, %v1974
        %v1987 = vadd.f32 %v1983, %v1985
        %v1988 = vrot.slane %v1987, 4
        %v1989 = vadd.f32 %v1987, %v1988
        %v1990 = vrot.slane %v1989, 2
        %v1991 = vadd.f32 %v1989, %v1990
        %v1992 = vrot.slane %v1991, 1
        %v1993 = vadd.f32 %v1991, %v1992
        %v1994 = vadd.f32 %v1984, %v1986
        %v1995 = vrot.slane %v1994, 4
        %v1996 = vadd.f32 %v1994, %v1995
        %v1997 = vrot.slane %v1996, 2
        %v1998 = vadd.f32 %v1996, %v1997
        %v1999 = vrot.slane %v1998, 1
        %v2000 = vadd.f32 %v1998, %v1999
        %s2001 = sld [smem:[#allocation2]]
        %v2002 = vstv %s2001
        %v2003 = vadd.f32 %v1993, %v2002
        %v2004 = vadd.f32 %v2000, %v2002
        %v2007 = vrot.slane %v2004, 7
        %vm2008 = vcmask 1040384
        %v2009 = vsel %vm2008, %v2003, %v2007
        %v2011 = vlaneseq
        %vm2012 = vcmp.ge.s32.totalorder %v2011, 0
        %vm2013 = vcmp.lt.s32.totalorder %v2011, 256
        %vm2014 = vmand %vm2012, %vm2013
        %2015 = vst.msk [vmem:[%s204] sm:$0x3] %vm2014, %v2009
        %s2016 = sand.u32 %s116, 1
        %s2017 = scalar_lea.sflag [#allocation4], %s2016
        %s2018 = sand.u32 %s116, 1
        %s2019 = smul.addr %s2018, 2
        %s2020 = scalar_lea.vmem [#allocation3], %s2019
        // Predicated region
        $region37: #{tpu_custom_call.1} parent=35 // pred_check
          %p2021 = pneg %p126
        $region38: #{tpu_custom_call.1} parent=35 // pred_check_branch
          %2023 = sbr.rel (%p2021) target = $region40
        $region39: #{tpu_custom_call.1} parent=35 // pred_region
          %s2024 = smul.u32 2, %s19
          %s2025 = ssub.s32 3, %s2024
          %p2026 = scmp.lt.s32.totalorder %s2025, 2
          %s2027 = scalar_select %p2026, %s2025, 2
          %s2028 = ssub.s32 2, %s2027
          %s2029 = sshll.u32 %s2028, 4
          %2030 = vsyncadd %s2017, %s2029
          %p2031 = scmp.ne.s32.totalorder 0, %s2027
          %s2032 = scalar_lea.hbm %s4, %s2024
          %s2033 = sshll.u32 %s2027, 4
          %s2034 = sshll.u32 %s2020, 4
          %s2035 = int_to_ptr.vmem [resolvable:$true] %s2034
          %s2036 = sshll.u32 %s2032, 4
          %s2037 = int_to_ptr.hbm [resolvable:$true] %s2036
          %2039 = dma.vmem_to_hbm [thread:$0]  (%p2031), %s2035, %s2033, %s2037, %s2017
        $region40: #{tpu_custom_call.1} parent=35 // pred_fallthru
          _
      $region36: #{tpu_custom_call.1} parent=5 // pred_fallthru
        _
      %p2040 = scmp.le.s32.totalorder 2, %s14
      // Predicated region
      $region41: #{tpu_custom_call.1} parent=5 // pred_check
        %p2041 = pneg %p2040
      $region42: #{tpu_custom_call.1} parent=5 // pred_check_branch
        %2043 = sbr.rel (%p2041) target = $region44
      $region43: #{tpu_custom_call.1} parent=5 // pred_region
        %s2044 = ssub.s32 %s14, 2
        // Predicated region
        $region45: #{tpu_custom_call.1} parent=43 // pred_check
          %p2045 = pneg %p132
        $region46: #{tpu_custom_call.1} parent=43 // pred_check_branch
          %2047 = sbr.rel (%p2045) target = $region48
        $region47: #{tpu_custom_call.1} parent=43 // pred_region
          %s2048 = sand.u32 %s117, 1
          %s2049 = scalar_lea.sflag [#allocation4], %s2048
          %s2050 = sand.u32 %s117, 1
          %s2051 = smul.addr %s2050, 2
          %s2052 = scalar_lea.vmem [#allocation3], %s2051
          %2054 = dma.done %s2049, 32
        $region48: #{tpu_custom_call.1} parent=43 // pred_fallthru
          _
      $region44: #{tpu_custom_call.1} parent=5 // pred_fallthru
        _
    $region6: #{tpu_custom_call.1} parent=1 // loop_footer
      %s18 = sadd.s32 1, %s14
    $region7: #{tpu_custom_call.1} parent=1 // loop_footer_branch
      %13 = sbr.rel target = $region3
    $region8: #{tpu_custom_call.1} parent=1 // loop_exit
      _
    %2055 = vsyncpa [#allocation4], 1
    %s2056 = scalar_lea.sflag [#allocation4], 1
    %2057 = vsyncpa %s2056, 1

</llo_original>
